<compile_context>
chip_gen: v6e
topology: v6e:2x2x1
jax: 0.10.0
libtpu: 0.0.40
codegen_flags: <defaults>
</compile_context>

<pallas_src>
import functools

import jax
import jax.numpy as jnp
from jax.experimental import pallas as pl
from jax.experimental.pallas import tpu as pltpu


def _round_up(x, m):
    return (x + m - 1) // m * m


# ---------------------------------------------------------------------------
# Pallas kernel: fused (patches @ weights) + bias + activation
# ---------------------------------------------------------------------------
def _matmul_bias_act_kernel(x_ref, w_ref, b_ref, o_ref, *, act):
    # bf16 inputs, fp32 accumulation on the MXU.
    acc = jnp.dot(x_ref[...], w_ref[...], preferred_element_type=jnp.float32)
    acc = acc + b_ref[...]
    if act == "relu":
        acc = jnp.maximum(acc, 0.0)
    elif act == "sigmoid":
        # exp and the reciprocal both go to the EUP slot (off the VALU path).
        acc = pl.reciprocal(1.0 + jnp.exp(-acc), approx=True)
    o_ref[...] = acc.astype(o_ref.dtype)


def matmul_bias_act(patches, w, b, act, tm_default=256):
    """patches: [M, K] bf16, w: [K, N] bf16, b: [1, N] fp32 -> [M, N] fp32."""
    M, K = patches.shape
    Kw, N = w.shape
    assert K == Kw and b.shape == (1, N)

    # M tile: multiple of 16 (bf16 sublane packing); K and N stay at their true
    # sizes because each block spans the full K / N extent (no 128 padding needed).
    tm = min(tm_default, _round_up(M, 16))
    Mp = _round_up(M, tm)
    if Mp != M:
        patches = jnp.pad(patches, ((0, Mp - M), (0, 0)))

    out = pl.pallas_call(
        functools.partial(_matmul_bias_act_kernel, act=act),
        grid=(Mp // tm,),
        in_specs=[
            pl.BlockSpec((tm, K), lambda i: (i, 0)),   # pipelined patch tiles
            pl.BlockSpec((K, N), lambda i: (0, 0)),    # weights resident across M grid
            pl.BlockSpec((1, N), lambda i: (0, 0)),    # bias resident
        ],
        out_specs=pl.BlockSpec((tm, N), lambda i: (i, 0)),   # lane-dense, true-Cout store
        out_shape=jax.ShapeDtypeStruct((Mp, N), jnp.float32),
        compiler_params=pltpu.CompilerParams(
            dimension_semantics=("parallel",),       # megacore sharding on v7x
            vmem_limit_bytes=32 * 1024 * 1024,       # tiles sized well under v7x's 64 MiB
        ),
    )(patches, w, b)
    return out[:M] if Mp != M else out


# ---------------------------------------------------------------------------
# Glue: patch extraction (plain JAX).  Patches are emitted directly in bf16.
# ---------------------------------------------------------------------------
def _im2col(x_nhwc, kh, kw, stride, pad):
    x = x_nhwc.astype(jnp.bfloat16)
    N, H, W, C = x.shape
    xp = jnp.pad(x, ((0, 0), (pad, pad), (pad, pad), (0, 0)))
    Ho = (H + 2 * pad - kh) // stride + 1
    Wo = (W + 2 * pad - kw) // stride + 1
    cols = [xp[:, di:di + stride * Ho:stride, dj:dj + stride * Wo:stride, :]
            for di in range(kh) for dj in range(kw)]
    patches = jnp.stack(cols, axis=3)                        # (N, Ho, Wo, kh*kw, C) bf16
    return patches.reshape(N * Ho * Wo, kh * kw * C), (N, Ho, Wo)


def conv2d(x_nhwc, wm, b, kh, kw, stride, pad, act):
    patches, (N, Ho, Wo) = _im2col(x_nhwc, kh, kw, stride, pad)
    out = matmul_bias_act(patches, wm, b, act)
    return out.reshape(N, Ho, Wo, -1)


def conv_transpose2d(x_nhwc, wm, b, kh, kw, stride, pad, act):
    N, H, W, C = x_nhwc.shape
    Hd, Wd = (H - 1) * stride + 1, (W - 1) * stride + 1
    xd = jnp.zeros((N, Hd, Wd, C), jnp.bfloat16).at[:, ::stride, ::stride, :].set(
        x_nhwc.astype(jnp.bfloat16))
    p_eq = kh - 1 - pad                                      # square kernel assumed
    patches, (N, Ho, Wo) = _im2col(xd, kh, kw, 1, p_eq)
    out = matmul_bias_act(patches, wm, b, act)
    return out.reshape(N, Ho, Wo, -1)


# ---------------------------------------------------------------------------
# Parameters (PyTorch layouts) + one-time conversion to matmul-ready layout
# ---------------------------------------------------------------------------
def init_params(key):
    ks = jax.random.split(key, 8)

    def u(k, shape, fan_in):
        bound = 1.0 / jnp.sqrt(float(fan_in))
        return jax.random.uniform(k, shape, jnp.float32, -bound, bound)

    return {
        # Conv2d weights: (Cout, Cin, kh, kw)
        "enc1_w": u(ks[0], (16, 1, 3, 3), 1 * 9),
        "enc1_b": u(ks[1], (16,), 1 * 9),
        "enc2_w": u(ks[2], (32, 16, 3, 3), 16 * 9),
        "enc2_b": u(ks[3], (32,), 16 * 9),
        # ConvTranspose2d weights: (Cin, Cout, kh, kw)
        "dec1_w": u(ks[4], (32, 16, 4, 4), 32 * 16),
        "dec1_b": u(ks[5], (16,), 32 * 16),
        "dec2_w": u(ks[6], (16, 1, 4, 4), 16 * 16),
        "dec2_b": u(ks[7], (1,), 16 * 16),
    }


def prepare_matmul_params(params):
    """Hoisted out of the forward path: weights -> [K, Cout] bf16 (K ordered (kh, kw, Cin)
    to match _im2col), biases -> [1, Cout] fp32."""
    def conv_w(w_oihw):
        Cout, Cin, kh, kw = w_oihw.shape
        return (jnp.transpose(w_oihw, (2, 3, 1, 0))
                .reshape(kh * kw * Cin, Cout).astype(jnp.bfloat16))

    def convT_w(w_iohw):
        Cin, Cout, kh, kw = w_iohw.shape
        wflip = jnp.flip(w_iohw, axis=(2, 3))                # flipped kernel for conv equiv.
        return (jnp.transpose(wflip, (2, 3, 0, 1))
                .reshape(kh * kw * Cin, Cout).astype(jnp.bfloat16))

    def bias(b):
        return b.reshape(1, -1).astype(jnp.float32)

    return {
        "enc1_wm": conv_w(params["enc1_w"]), "enc1_b": bias(params["enc1_b"]),
        "enc2_wm": conv_w(params["enc2_w"]), "enc2_b": bias(params["enc2_b"]),
        "dec1_wm": convT_w(params["dec1_w"]), "dec1_b": bias(params["dec1_b"]),
        "dec2_wm": convT_w(params["dec2_w"]), "dec2_b": bias(params["dec2_b"]),
    }


# ---------------------------------------------------------------------------
# ConvMAE forward (matches the PyTorch module)
# ---------------------------------------------------------------------------
def conv_mae_forward(mm, x_nchw):
    x = jnp.transpose(x_nchw, (0, 2, 3, 1))                  # NCHW -> NHWC
    # encoder
    z = conv2d(x, mm["enc1_wm"], mm["enc1_b"], 3, 3, stride=2, pad=1, act="relu")
    z = conv2d(z, mm["enc2_wm"], mm["enc2_b"], 3, 3, stride=2, pad=1, act="relu")
    # decoder
    y = conv_transpose2d(z, mm["dec1_wm"], mm["dec1_b"], 4, 4, stride=2, pad=1, act="relu")
    y = conv_transpose2d(y, mm["dec2_wm"], mm["dec2_b"], 4, 4, stride=2, pad=1, act="sigmoid")
    return jnp.transpose(y, (0, 3, 1, 2))                    # NHWC -> NCHW


# ---------------------------------------------------------------------------
# Pure-JAX fp32 reference (XLA convs) for a correctness cross-check
# ---------------------------------------------------------------------------
def reference_forward(params, x_nchw):
    dn = ("NCHW", "OIHW", "NCHW")

    def conv(x, w, b, stride, pad):
        y = jax.lax.conv_general_dilated(x, w, (stride, stride), [(pad, pad)] * 2,
                                         dimension_numbers=dn)
        return y + b.reshape(1, -1, 1, 1)

    def convT(x, w, b, stride, pad):
        wc = jnp.transpose(jnp.flip(w, (2, 3)), (1, 0, 2, 3))
        k = w.shape[2]
        p = k - 1 - pad
        y = jax.lax.conv_general_dilated(x, wc, (1, 1), [(p, p)] * 2,
                                         lhs_dilation=(stride, stride),
                                         dimension_numbers=dn)
        return y + b.reshape(1, -1, 1, 1)

    z = jax.nn.relu(conv(x_nchw, params["enc1_w"], params["enc1_b"], 2, 1))
    z = jax.nn.relu(conv(z, params["enc2_w"], params["enc2_b"], 2, 1))
    y = jax.nn.relu(convT(z, params["dec1_w"], params["dec1_b"], 2, 1))
    y = jax.nn.sigmoid(convT(y, params["dec2_w"], params["dec2_b"], 2, 1))
    return y


if __name__ == "__main__":
    key = jax.random.PRNGKey(0)
    pkey, xkey = jax.random.split(key)
    params = init_params(pkey)
    mm_params = prepare_matmul_params(params)                # one-time weight layout prep

    # input: batch=2, 1 channel, 16x16 spatial (NCHW, as in the PyTorch module)
    x = jax.random.uniform(xkey, (2, 1, 16, 16), jnp.float32)

    fwd = jax.jit(conv_mae_forward)
    out = jax.block_until_ready(fwd(mm_params, x))

    assert out.shape == (2, 1, 16, 16), out.shape

    ref = jax.block_until_ready(reference_forward(params, x))
    err = float(jnp.max(jnp.abs(out - ref)))
    # bf16 inputs with fp32 accumulation vs. fp32 XLA reference -> loosened tolerance.
    assert err < 5e-2, f"max abs error vs reference: {err}"

    print("KERNEL_OK")
</pallas_src>

<mosaic_0001>
module attributes {stable_mosaic.version = 11 : i64} {
  func.func @_matmul_bias_act_kernel(%arg0: i32, %arg1: memref<128x9xbf16, #tpu.memory_space<vmem>>, %arg2: memref<9x16xbf16, #tpu.memory_space<vmem>>, %arg3: memref<1x16xf32, #tpu.memory_space<vmem>>, %arg4: memref<128x16xf32, #tpu.memory_space<vmem>>) attributes {dimension_semantics = [#tpu.dimension_semantics<parallel>], iteration_bounds = array<i64: 1>, scalar_prefetch = 0 : i64, scratch_operands = 0 : i64, tpu.core_type = #tpu.core_type<tc>, window_params = [{transform_indices = @transform_0, window_bounds = array<i64: 128, 9>}, {pipeline_mode = #tpu.pipeline_mode<synchronous>, transform_indices = @transform_1, window_bounds = array<i64: 9, 16>}, {pipeline_mode = #tpu.pipeline_mode<synchronous>, transform_indices = @transform_2, window_bounds = array<i64: 1, 16>}, {transform_indices = @transform_3, window_bounds = array<i64: 128, 16>}]} {
    %c0 = arith.constant 0 : index
    %c0_0 = arith.constant 0 : index
    %0 = vector.load %arg1[%c0, %c0_0] : memref<128x9xbf16, #tpu.memory_space<vmem>>, vector<128x9xbf16>
    %c0_1 = arith.constant 0 : index
    %c0_2 = arith.constant 0 : index
    %1 = vector.load %arg2[%c0_1, %c0_2] : memref<9x16xbf16, #tpu.memory_space<vmem>>, vector<9x16xbf16>
    %cst = arith.constant dense<0.000000e+00> : vector<128x16xf32>
    %2 = tpu.matmul %0, %1, %cst {dimension_numbers = #tpu.dot_dimension_numbers<[1], [0], [0], [1], [0, 0, 1, 1], [], []>} : vector<128x9xbf16>, vector<9x16xbf16>, vector<128x16xf32> -> vector<128x16xf32>
    %c0_3 = arith.constant 0 : index
    %c0_4 = arith.constant 0 : index
    %3 = vector.load %arg3[%c0_3, %c0_4] : memref<1x16xf32, #tpu.memory_space<vmem>>, vector<1x16xf32>
    %4 = vector.broadcast %3 : vector<1x16xf32> to vector<128x16xf32>
    %5 = arith.addf %2, %4 : vector<128x16xf32>
    %cst_5 = arith.constant 0.000000e+00 : f32
    %6 = vector.broadcast %cst_5 : f32 to vector<128x16xf32>
    %7 = arith.maximumf %5, %6 : vector<128x16xf32>
    %c0_6 = arith.constant 0 : index
    %c0_7 = arith.constant 0 : index
    %8 = vector.load %arg4[%c0_6, %c0_7] : memref<128x16xf32, #tpu.memory_space<vmem>>, vector<128x16xf32>
    tpu.vector_store %arg4[%c0_6, %c0_7], %7 {strides = array<i32>} : memref<128x16xf32, #tpu.memory_space<vmem>>, vector<128x16xf32>,
    return
  }
  func.func @transform_0(%arg0: i32) -> (i32, i32) {
    %c0_i32 = arith.constant 0 : i32
    %c0_i32_0 = arith.constant 0 : i32
    return %arg0, %c0_i32 : i32, i32
  }
  func.func @transform_1(%arg0: i32) -> (i32, i32) {
    %c0_i32 = arith.constant 0 : i32
    %c0_i32_0 = arith.constant 0 : i32
    %c0_i32_1 = arith.constant 0 : i32
    return %c0_i32, %c0_i32_0 : i32, i32
  }
  func.func @transform_2(%arg0: i32) -> (i32, i32) {
    %c0_i32 = arith.constant 0 : i32
    %c0_i32_0 = arith.constant 0 : i32
    %c0_i32_1 = arith.constant 0 : i32
    return %c0_i32, %c0_i32_0 : i32, i32
  }
  func.func @transform_3(%arg0: i32) -> (i32, i32) {
    %c0_i32 = arith.constant 0 : i32
    %c0_i32_0 = arith.constant 0 : i32
    return %arg0, %c0_i32 : i32, i32
  }
}

module attributes {stable_mosaic.version = 11 : i64} {
  func.func @_matmul_bias_act_kernel(%arg0: i32, %arg1: memref<32x144xbf16, #tpu.memory_space<vmem>>, %arg2: memref<144x32xbf16, #tpu.memory_space<vmem>>, %arg3: memref<1x32xf32, #tpu.memory_space<vmem>>, %arg4: memref<32x32xf32, #tpu.memory_space<vmem>>) attributes {dimension_semantics = [#tpu.dimension_semantics<parallel>], iteration_bounds = array<i64: 1>, scalar_prefetch = 0 : i64, scratch_operands = 0 : i64, tpu.core_type = #tpu.core_type<tc>, window_params = [{transform_indices = @transform_0, window_bounds = array<i64: 32, 144>}, {pipeline_mode = #tpu.pipeline_mode<synchronous>, transform_indices = @transform_1, window_bounds = array<i64: 144, 32>}, {pipeline_mode = #tpu.pipeline_mode<synchronous>, transform_indices = @transform_2, window_bounds = array<i64: 1, 32>}, {transform_indices = @transform_3, window_bounds = array<i64: 32, 32>}]} {
    %c0 = arith.constant 0 : index
    %c0_0 = arith.constant 0 : index
    %0 = vector.load %arg1[%c0, %c0_0] : memref<32x144xbf16, #tpu.memory_space<vmem>>, vector<32x144xbf16>
    %c0_1 = arith.constant 0 : index
    %c0_2 = arith.constant 0 : index
    %1 = vector.load %arg2[%c0_1, %c0_2] : memref<144x32xbf16, #tpu.memory_space<vmem>>, vector<144x32xbf16>
    %cst = arith.constant dense<0.000000e+00> : vector<32x32xf32>
    %2 = tpu.matmul %0, %1, %cst {dimension_numbers = #tpu.dot_dimension_numbers<[1], [0], [0], [1], [0, 0, 1, 1], [], []>} : vector<32x144xbf16>, vector<144x32xbf16>, vector<32x32xf32> -> vector<32x32xf32>
    %c0_3 = arith.constant 0 : index
    %c0_4 = arith.constant 0 : index
    %3 = vector.load %arg3[%c0_3, %c0_4] : memref<1x32xf32, #tpu.memory_space<vmem>>, vector<1x32xf32>
    %4 = vector.broadcast %3 : vector<1x32xf32> to vector<32x32xf32>
    %5 = arith.addf %2, %4 : vector<32x32xf32>
    %cst_5 = arith.constant 0.000000e+00 : f32
    %6 = vector.broadcast %cst_5 : f32 to vector<32x32xf32>
    %7 = arith.maximumf %5, %6 : vector<32x32xf32>
    %c0_6 = arith.constant 0 : index
    %c0_7 = arith.constant 0 : index
    %8 = vector.load %arg4[%c0_6, %c0_7] : memref<32x32xf32, #tpu.memory_space<vmem>>, vector<32x32xf32>
    tpu.vector_store %arg4[%c0_6, %c0_7], %7 {strides = array<i32>} : memref<32x32xf32, #tpu.memory_space<vmem>>, vector<32x32xf32>,
    return
  }
  func.func @transform_0(%arg0: i32) -> (i32, i32) {
    %c0_i32 = arith.constant 0 : i32
    %c0_i32_0 = arith.constant 0 : i32
    return %arg0, %c0_i32 : i32, i32
  }
  func.func @transform_1(%arg0: i32) -> (i32, i32) {
    %c0_i32 = arith.constant 0 : i32
    %c0_i32_0 = arith.constant 0 : i32
    %c0_i32_1 = arith.constant 0 : i32
    return %c0_i32, %c0_i32_0 : i32, i32
  }
  func.func @transform_2(%arg0: i32) -> (i32, i32) {
    %c0_i32 = arith.constant 0 : i32
    %c0_i32_0 = arith.constant 0 : i32
    %c0_i32_1 = arith.constant 0 : i32
    return %c0_i32, %c0_i32_0 : i32, i32
  }
  func.func @transform_3(%arg0: i32) -> (i32, i32) {
    %c0_i32 = arith.constant 0 : i32
    %c0_i32_0 = arith.constant 0 : i32
    return %arg0, %c0_i32 : i32, i32
  }
}

module attributes {stable_mosaic.version = 11 : i64} {
  func.func @_matmul_bias_act_kernel(%arg0: i32, %arg1: memref<128x512xbf16, #tpu.memory_space<vmem>>, %arg2: memref<512x16xbf16, #tpu.memory_space<vmem>>, %arg3: memref<1x16xf32, #tpu.memory_space<vmem>>, %arg4: memref<128x16xf32, #tpu.memory_space<vmem>>) attributes {dimension_semantics = [#tpu.dimension_semantics<parallel>], iteration_bounds = array<i64: 1>, scalar_prefetch = 0 : i64, scratch_operands = 0 : i64, tpu.core_type = #tpu.core_type<tc>, window_params = [{transform_indices = @transform_0, window_bounds = array<i64: 128, 512>}, {pipeline_mode = #tpu.pipeline_mode<synchronous>, transform_indices = @transform_1, window_bounds = array<i64: 512, 16>}, {pipeline_mode = #tpu.pipeline_mode<synchronous>, transform_indices = @transform_2, window_bounds = array<i64: 1, 16>}, {transform_indices = @transform_3, window_bounds = array<i64: 128, 16>}]} {
    %c0 = arith.constant 0 : index
    %c0_0 = arith.constant 0 : index
    %0 = vector.load %arg1[%c0, %c0_0] : memref<128x512xbf16, #tpu.memory_space<vmem>>, vector<128x512xbf16>
    %c0_1 = arith.constant 0 : index
    %c0_2 = arith.constant 0 : index
    %1 = vector.load %arg2[%c0_1, %c0_2] : memref<512x16xbf16, #tpu.memory_space<vmem>>, vector<512x16xbf16>
    %cst = arith.constant dense<0.000000e+00> : vector<128x16xf32>
    %2 = tpu.matmul %0, %1, %cst {dimension_numbers = #tpu.dot_dimension_numbers<[1], [0], [0], [1], [0, 0, 1, 1], [], []>} : vector<128x512xbf16>, vector<512x16xbf16>, vector<128x16xf32> -> vector<128x16xf32>
    %c0_3 = arith.constant 0 : index
    %c0_4 = arith.constant 0 : index
    %3 = vector.load %arg3[%c0_3, %c0_4] : memref<1x16xf32, #tpu.memory_space<vmem>>, vector<1x16xf32>
    %4 = vector.broadcast %3 : vector<1x16xf32> to vector<128x16xf32>
    %5 = arith.addf %2, %4 : vector<128x16xf32>
    %cst_5 = arith.constant 0.000000e+00 : f32
    %6 = vector.broadcast %cst_5 : f32 to vector<128x16xf32>
    %7 = arith.maximumf %5, %6 : vector<128x16xf32>
    %c0_6 = arith.constant 0 : index
    %c0_7 = arith.constant 0 : index
    %8 = vector.load %arg4[%c0_6, %c0_7] : memref<128x16xf32, #tpu.memory_space<vmem>>, vector<128x16xf32>
    tpu.vector_store %arg4[%c0_6, %c0_7], %7 {strides = array<i32>} : memref<128x16xf32, #tpu.memory_space<vmem>>, vector<128x16xf32>,
    return
  }
  func.func @transform_0(%arg0: i32) -> (i32, i32) {
    %c0_i32 = arith.constant 0 : i32
    %c0_i32_0 = arith.constant 0 : i32
    return %arg0, %c0_i32 : i32, i32
  }
  func.func @transform_1(%arg0: i32) -> (i32, i32) {
    %c0_i32 = arith.constant 0 : i32
    %c0_i32_0 = arith.constant 0 : i32
    %c0_i32_1 = arith.constant 0 : i32
    return %c0_i32, %c0_i32_0 : i32, i32
  }
  func.func @transform_2(%arg0: i32) -> (i32, i32) {
    %c0_i32 = arith.constant 0 : i32
    %c0_i32_0 = arith.constant 0 : i32
    %c0_i32_1 = arith.constant 0 : i32
    return %c0_i32, %c0_i32_0 : i32, i32
  }
  func.func @transform_3(%arg0: i32) -> (i32, i32) {
    %c0_i32 = arith.constant 0 : i32
    %c0_i32_0 = arith.constant 0 : i32
    return %arg0, %c0_i32 : i32, i32
  }
}

module attributes {stable_mosaic.version = 11 : i64} {
  func.func @_matmul_bias_act_kernel(%arg0: i32, %arg1: memref<256x256xbf16, #tpu.memory_space<vmem>>, %arg2: memref<256x1xbf16, #tpu.memory_space<vmem>>, %arg3: memref<1x1xf32, #tpu.memory_space<vmem>>, %arg4: memref<256x1xf32, #tpu.memory_space<vmem>>) attributes {dimension_semantics = [#tpu.dimension_semantics<parallel>], iteration_bounds = array<i64: 2>, scalar_prefetch = 0 : i64, scratch_operands = 0 : i64, tpu.core_type = #tpu.core_type<tc>, window_params = [{transform_indices = @transform_0, window_bounds = array<i64: 256, 256>}, {pipeline_mode = #tpu.pipeline_mode<synchronous>, transform_indices = @transform_1, window_bounds = array<i64: 256, 1>}, {pipeline_mode = #tpu.pipeline_mode<synchronous>, transform_indices = @transform_2, window_bounds = array<i64: 1, 1>}, {transform_indices = @transform_3, window_bounds = array<i64: 256, 1>}]} {
    %c0 = arith.constant 0 : index
    %c0_0 = arith.constant 0 : index
    %0 = vector.load %arg1[%c0, %c0_0] : memref<256x256xbf16, #tpu.memory_space<vmem>>, vector<256x256xbf16>
    %c0_1 = arith.constant 0 : index
    %c0_2 = arith.constant 0 : index
    %1 = vector.load %arg2[%c0_1, %c0_2] : memref<256x1xbf16, #tpu.memory_space<vmem>>, vector<256x1xbf16>
    %cst = arith.constant dense<0.000000e+00> : vector<256x1xf32>
    %2 = tpu.matmul %0, %1, %cst {dimension_numbers = #tpu.dot_dimension_numbers<[1], [0], [0], [1], [0, 0, 1, 1], [], []>} : vector<256x256xbf16>, vector<256x1xbf16>, vector<256x1xf32> -> vector<256x1xf32>
    %c0_3 = arith.constant 0 : index
    %c0_4 = arith.constant 0 : index
    %3 = vector.load %arg3[%c0_3, %c0_4] : memref<1x1xf32, #tpu.memory_space<vmem>>, vector<1x1xf32>
    %4 = vector.broadcast %3 : vector<1x1xf32> to vector<256x1xf32>
    %5 = arith.addf %2, %4 : vector<256x1xf32>
    %cst_5 = arith.constant 0.000000e+00 : f32
    %6 = vector.broadcast %cst_5 : f32 to vector<256x1xf32>
    %7 = arith.subf %6, %5 : vector<256x1xf32>
    %8 = math.exp %7 : vector<256x1xf32>
    %cst_6 = arith.constant 1.000000e+00 : f32
    %9 = vector.broadcast %cst_6 : f32 to vector<256x1xf32>
    %10 = arith.addf %9, %8 : vector<256x1xf32>
    %11 = tpu.reciprocal %10 {approx = true} : vector<256x1xf32> -> vector<256x1xf32>
    %c0_7 = arith.constant 0 : index
    %c0_8 = arith.constant 0 : index
    %12 = vector.load %arg4[%c0_7, %c0_8] : memref<256x1xf32, #tpu.memory_space<vmem>>, vector<256x1xf32>
    tpu.vector_store %arg4[%c0_7, %c0_8], %11 {strides = array<i32>} : memref<256x1xf32, #tpu.memory_space<vmem>>, vector<256x1xf32>,
    return
  }
  func.func @transform_0(%arg0: i32) -> (i32, i32) {
    %c0_i32 = arith.constant 0 : i32
    %c0_i32_0 = arith.constant 0 : i32
    return %arg0, %c0_i32 : i32, i32
  }
  func.func @transform_1(%arg0: i32) -> (i32, i32) {
    %c0_i32 = arith.constant 0 : i32
    %c0_i32_0 = arith.constant 0 : i32
    %c0_i32_1 = arith.constant 0 : i32
    return %c0_i32, %c0_i32_0 : i32, i32
  }
  func.func @transform_2(%arg0: i32) -> (i32, i32) {
    %c0_i32 = arith.constant 0 : i32
    %c0_i32_0 = arith.constant 0 : i32
    %c0_i32_1 = arith.constant 0 : i32
    return %c0_i32, %c0_i32_0 : i32, i32
  }
  func.func @transform_3(%arg0: i32) -> (i32, i32) {
    %c0_i32 = arith.constant 0 : i32
    %c0_i32_0 = arith.constant 0 : i32
    return %arg0, %c0_i32 : i32, i32
  }
}

</mosaic_0001>

<llo_original>
// kernel: conv_mae_forward.4
$region0: #{conv_mae_forward.4}
  #allocation0 [shape = 'u32[]', space=smem, size = 0x4, offset = 0x4, fixed_abs, tag = 'smem constant byte address 0x4 - core index']
  #allocation1 [shape = 'u32[144,128]{1,0:T(1,128)}', space=vmem, size = 0x12000, scoped, tag = 'internal scratch']
  %s0 = inlined_call_operand.vmem [shape: bf16[128,9], index: 0, kind: input, shape index: {}]
  %s1 = inlined_call_operand.hbm [shape: bf16[9,16], index: 1, kind: input, shape index: {}]
  %s2 = inlined_call_operand.hbm [shape: f32[1,16], index: 2, kind: input, shape index: {}]
  %s3 = inlined_call_operand.vmem [shape: f32[128,16], index: 3, kind: output, shape index: {}]
  %s4 = sld [smem:[#allocation0]]
  $region30: #{conv_mae_forward.4} parent=0
    _
  %s6 = ssub.s32 1, %s4
  %s7 = scalar_select 0, %s6, %s4
  $region1: #{conv_mae_forward.4} parent=0
    #allocation2 [shape = 'u8[4096]{0}', space=vmem, size = 0x1000, scoped, tag = 'input window, operand 1, single buffered']
    #allocation3 [shape = 's32[1]{0}', space=sflag, size = 0x4, scoped, tag = 'scoped memory for conv_mae_forward.4']
    #allocation4 [shape = 'u8[512]{0}', space=vmem, size = 0x400, scoped, tag = 'input window, operand 2, single buffered']
    #allocation5 [shape = 's32[1]{0}', space=sflag, size = 0x4, scoped, tag = 'scoped memory for conv_mae_forward.4']
    %8 = vsyncpa [#allocation3], 0
    %9 = vsyncpa [#allocation5], 0
    // Predicated region
    $region2: #{conv_mae_forward.4} parent=1 // pred_check
      _
    $region3: #{conv_mae_forward.4} parent=1 // pred_check_branch
      %11 = sbr.rel (0) target = $region5
    $region4: #{conv_mae_forward.4} parent=1 // pred_region
      _
    $region5: #{conv_mae_forward.4} parent=1 // pred_fallthru
      _
    // Predicated region
    $region6: #{conv_mae_forward.4} parent=1 // pred_check
      _
    $region7: #{conv_mae_forward.4} parent=1 // pred_check_branch
      %13 = sbr.rel (0) target = $region9
    $region8: #{conv_mae_forward.4} parent=1 // pred_region
      %s15 = ssub.s32 128, 128
      %16 = vsyncadd [#allocation3], %s15
      %s17 = sshll.u32 [#allocation2], 4
      %s18 = int_to_ptr.vmem [resolvable:$true] %s17
      %23 = dma.hbm_to_vmem [thread:$0]  %s1, 128, %s18, [#allocation3], 64, 64, 4
    $region9: #{conv_mae_forward.4} parent=1 // pred_fallthru
      _
    // Predicated region
    $region10: #{conv_mae_forward.4} parent=1 // pred_check
      _
    $region11: #{conv_mae_forward.4} parent=1 // pred_check_branch
      %25 = sbr.rel (0) target = $region13
    $region12: #{conv_mae_forward.4} parent=1 // pred_region
      %s27 = ssub.s32 16, 16
      %28 = vsyncadd [#allocation5], %s27
      %s30 = sshll.u32 [#allocation4], 4
      %s31 = int_to_ptr.vmem [resolvable:$true] %s30
      %33 = dma.hbm_to_vmem [thread:$0]  %s2, 16, %s31, [#allocation5]
    $region13: #{conv_mae_forward.4} parent=1 // pred_fallthru
      _
    // Predicated region
    $region14: #{conv_mae_forward.4} parent=1 // pred_check
      _
    $region15: #{conv_mae_forward.4} parent=1 // pred_check_branch
      %35 = sbr.rel (0) target = $region17
    $region16: #{conv_mae_forward.4} parent=1 // pred_region
      %36 = dma.done [#allocation3], 128
    $region17: #{conv_mae_forward.4} parent=1 // pred_fallthru
      _
    // Predicated region
    $region18: #{conv_mae_forward.4} parent=1 // pred_check
      _
    $region19: #{conv_mae_forward.4} parent=1 // pred_check_branch
      %38 = sbr.rel (0) target = $region21
    $region20: #{conv_mae_forward.4} parent=1 // pred_region
      %39 = dma.done [#allocation5], 16
    $region21: #{conv_mae_forward.4} parent=1 // pred_fallthru
      _
    %v41 = vld [vmem:[%s0] sm:$0xf]
    %v42 = vld [vmem:[%s0 + $0x4] sm:$0xf]
    %v43 = vld [vmem:[%s0 + $0x8] sm:$0xf]
    %v44 = vld [vmem:[%s0 + $0xc] sm:$0xf]
    %v45 = vld [vmem:[%s0 + $0x10] sm:$0xf]
    %v46 = vld [vmem:[%s0 + $0x14] sm:$0xf]
    %v47 = vld [vmem:[%s0 + $0x18] sm:$0xf]
    %v48 = vld [vmem:[%s0 + $0x1c] sm:$0xf]
    %v49 = vld [vmem:[%s0 + $0x20] sm:$0xf]
    %v50 = vld [vmem:[%s0 + $0x24] sm:$0xf]
    %v51 = vld [vmem:[%s0 + $0x28] sm:$0xf]
    %v52 = vld [vmem:[%s0 + $0x2c] sm:$0xf]
    %v53 = vld [vmem:[%s0 + $0x30] sm:$0xf]
    %v54 = vld [vmem:[%s0 + $0x34] sm:$0xf]
    %v55 = vld [vmem:[%s0 + $0x38] sm:$0xf]
    %v56 = vld [vmem:[%s0 + $0x3c] sm:$0xf]
    %v57 = vld [vmem:[#allocation2] sm:$0xf]
    %v58 = vld [vmem:[#allocation2 + $0x4] sm:$0x1]
    %v59 = vld [vmem:[#allocation4] sm:$0x1]
    %v61 = vlaneseq
    %v62 = vshrl.u32 %v61, 7
    %v63 = vsub.s32 0, %v62
    %v64 = vrot.slane %v59, %v63
    %v82 = vunpack.c.l.b16 %v41
    %v83 = vunpack.c.l.b16 %v42
    %v84 = vunpack.c.l.b16 %v43
    %v85 = vunpack.c.l.b16 %v44
    %v86 = vunpack.c.l.b16 %v45
    %v87 = vunpack.c.l.b16 %v46
    %v88 = vunpack.c.l.b16 %v47
    %v89 = vunpack.c.l.b16 %v48
    %v90 = vunpack.c.l.b16 %v49
    %v91 = vunpack.c.l.b16 %v50
    %v92 = vunpack.c.l.b16 %v51
    %v93 = vunpack.c.l.b16 %v52
    %v94 = vunpack.c.l.b16 %v53
    %v95 = vunpack.c.l.b16 %v54
    %v96 = vunpack.c.l.b16 %v55
    %v97 = vunpack.c.l.b16 %v56
    %v98 = vpack.c.b16 %v83, %v82
    %v99 = vpack.c.b16 %v85, %v84
    %v100 = vpack.c.b16 %v87, %v86
    %v101 = vpack.c.b16 %v89, %v88
    %v102 = vpack.c.b16 %v91, %v90
    %v103 = vpack.c.b16 %v93, %v92
    %v104 = vpack.c.b16 %v95, %v94
    %v105 = vpack.c.b16 %v97, %v96
    %v108 = vunpack.c.l.b16 %v57
    %v109 = vunpack.c.l.b16 %v58
    %v110 = vpack.c.b16 %v109, %v108
    %vm111 = vcmask 72704
    %v113 = vsel %vm111, %v98, 0
    %v116 = vsel %vm111, %v99, 0
    %v119 = vsel %vm111, %v100, 0
    %v122 = vsel %vm111, %v101, 0
    %v125 = vsel %vm111, %v102, 0
    %v128 = vsel %vm111, %v103, 0
    %v131 = vsel %vm111, %v104, 0
    %v134 = vsel %vm111, %v105, 0
    %vm136 = vcmask 1043456
    %vm137 = vcmask 1044480
    %v138 = vsel %vm136, 4294967295, 65535
    %v139 = vsel %vm137, %v138, 0
    %v141 = vand.u32 %v110, %v139
    %143 = vmatprep.subr.bf16.mxu0 0
    %144 = vmatpush1.bf16.msra.mxu0 0
    %145 = vmatprep.subr.bf16.mxu0 0
    %146 = vmatpush1.bf16.msra.mxu0 0
    %147 = vmatprep.subr.bf16.mxu0 0
    %148 = vmatpush1.bf16.msra.mxu0 0
    %149 = vmatprep.subr.bf16.mxu0 0
    %150 = vmatpush1.bf16.msra.mxu0 0
    %151 = vmatprep.subr.bf16.mxu0 0
    %152 = vmatpush1.bf16.msra.mxu0 0
    %153 = vmatprep.subr.bf16.mxu0 0
    %154 = vmatpush1.bf16.msra.mxu0 0
    %155 = vmatprep.subr.bf16.mxu0 0
    %156 = vmatpush1.bf16.msra.mxu0 0
    %157 = vmatprep.subr.bf16.mxu0 0
    %158 = vmatpush1.bf16.msra.mxu0 %v141
    %159 = vmatprep.subr.bf16.mxu0 0
    %160 = vmatpush2.bf16.msra.mxu0 0
    %161 = vmatprep.subr.bf16.mxu0 0
    %162 = vmatpush2.bf16.msra.mxu0 0
    %163 = vmatprep.subr.bf16.mxu0 0
    %164 = vmatpush2.bf16.msra.mxu0 0
    %165 = vmatprep.subr.bf16.mxu0 0
    %166 = vmatpush2.bf16.msra.mxu0 0
    %167 = vmatprep.subr.bf16.mxu0 0
    %168 = vmatpush2.bf16.msra.mxu0 0
    %169 = vmatprep.subr.bf16.mxu0 0
    %170 = vmatpush2.bf16.msra.mxu0 0
    %171 = vmatprep.subr.bf16.mxu0 0
    %172 = vmatpush2.bf16.msra.mxu0 0
    %173 = vmatprep.subr.bf16.mxu0 0
    %174 = vmatpush2.bf16.msra.mxu0 0
    %175 = vmatprep.mubr.bf16.mxu0 0
    %176 = vmatmul.mubr.bf16.gmra.mxu0 %v113
    %v177 = vpop.f32.mrf.mxu0
    %v178 = vadd.f32 %v64, %v177
    %v179 = vpop.f32.mrf.mxu0
    %v180 = vpop.f32.mrf.mxu0
    %v181 = vadd.f32 %v64, %v180
    %v182 = vpop.f32.mrf.mxu0
    %183 = vmatprep.mubr.bf16.mxu0 0
    %184 = vmatmul.mubr.bf16.gmra.mxu0 %v116
    %v185 = vpop.f32.mrf.mxu0
    %v186 = vadd.f32 %v64, %v185
    %v187 = vpop.f32.mrf.mxu0
    %v188 = vpop.f32.mrf.mxu0
    %v189 = vadd.f32 %v64, %v188
    %v190 = vpop.f32.mrf.mxu0
    %191 = vmatprep.mubr.bf16.mxu0 0
    %192 = vmatmul.mubr.bf16.gmra.mxu0 %v119
    %v193 = vpop.f32.mrf.mxu0
    %v194 = vadd.f32 %v64, %v193
    %v195 = vpop.f32.mrf.mxu0
    %v196 = vpop.f32.mrf.mxu0
    %v197 = vadd.f32 %v64, %v196
    %v198 = vpop.f32.mrf.mxu0
    %199 = vmatprep.mubr.bf16.mxu0 0
    %200 = vmatmul.mubr.bf16.gmra.mxu0 %v122
    %v201 = vpop.f32.mrf.mxu0
    %v202 = vadd.f32 %v64, %v201
    %v203 = vpop.f32.mrf.mxu0
    %v204 = vpop.f32.mrf.mxu0
    %v205 = vadd.f32 %v64, %v204
    %v206 = vpop.f32.mrf.mxu0
    %207 = vmatprep.mubr.bf16.mxu0 0
    %208 = vmatmul.mubr.bf16.gmra.mxu0 %v125
    %v209 = vpop.f32.mrf.mxu0
    %v210 = vadd.f32 %v64, %v209
    %v211 = vpop.f32.mrf.mxu0
    %v212 = vpop.f32.mrf.mxu0
    %v213 = vadd.f32 %v64, %v212
    %v214 = vpop.f32.mrf.mxu0
    %215 = vmatprep.mubr.bf16.mxu0 0
    %216 = vmatmul.mubr.bf16.gmra.mxu0 %v128
    %v217 = vpop.f32.mrf.mxu0
    %v218 = vadd.f32 %v64, %v217
    %v219 = vpop.f32.mrf.mxu0
    %v220 = vpop.f32.mrf.mxu0
    %v221 = vadd.f32 %v64, %v220
    %v222 = vpop.f32.mrf.mxu0
    %223 = vmatprep.mubr.bf16.mxu0 0
    %224 = vmatmul.mubr.bf16.gmra.mxu0 %v131
    %v225 = vpop.f32.mrf.mxu0
    %v226 = vadd.f32 %v64, %v225
    %v227 = vpop.f32.mrf.mxu0
    %v228 = vpop.f32.mrf.mxu0
    %v229 = vadd.f32 %v64, %v228
    %v230 = vpop.f32.mrf.mxu0
    %231 = vmatprep.mubr.bf16.mxu0 0
    %232 = vmatmul.mubr.bf16.gmra.mxu0 %v134
    %v233 = vpop.f32.mrf.mxu0
    %v234 = vadd.f32 %v64, %v233
    %v235 = vpop.f32.mrf.mxu0
    %v236 = vpop.f32.mrf.mxu0
    %v237 = vadd.f32 %v64, %v236
    %v238 = vpop.f32.mrf.mxu0
    %239 = vdwg.mxu0
    %v240 = vmax.f32 %v178, 0.0
    %v241 = vmax.f32 %v181, 0.0
    %v242 = vmax.f32 %v186, 0.0
    %v243 = vmax.f32 %v189, 0.0
    %v244 = vmax.f32 %v194, 0.0
    %v245 = vmax.f32 %v197, 0.0
    %v246 = vmax.f32 %v202, 0.0
    %v247 = vmax.f32 %v205, 0.0
    %v248 = vmax.f32 %v210, 0.0
    %v249 = vmax.f32 %v213, 0.0
    %v250 = vmax.f32 %v218, 0.0
    %v251 = vmax.f32 %v221, 0.0
    %v252 = vmax.f32 %v226, 0.0
    %v253 = vmax.f32 %v229, 0.0
    %v254 = vmax.f32 %v234, 0.0
    %v255 = vmax.f32 %v237, 0.0
    %vm256 = vcmask 130048
    %257 = vst.msk [vmem:[%s3] sm:$0xff] %vm256, %v240
    %258 = vst.msk [vmem:[%s3 + $0x8] sm:$0xff] %vm256, %v241
    %259 = vst.msk [vmem:[%s3 + $0x10] sm:$0xff] %vm256, %v242
    %260 = vst.msk [vmem:[%s3 + $0x18] sm:$0xff] %vm256, %v243
    %261 = vst.msk [vmem:[%s3 + $0x20] sm:$0xff] %vm256, %v244
    %262 = vst.msk [vmem:[%s3 + $0x28] sm:$0xff] %vm256, %v245
    %263 = vst.msk [vmem:[%s3 + $0x30] sm:$0xff] %vm256, %v246
    %264 = vst.msk [vmem:[%s3 + $0x38] sm:$0xff] %vm256, %v247
    %265 = vst.msk [vmem:[%s3 + $0x40] sm:$0xff] %vm256, %v248
    %266 = vst.msk [vmem:[%s3 + $0x48] sm:$0xff] %vm256, %v249
    %267 = vst.msk [vmem:[%s3 + $0x50] sm:$0xff] %vm256, %v250
    %268 = vst.msk [vmem:[%s3 + $0x58] sm:$0xff] %vm256, %v251
    %269 = vst.msk [vmem:[%s3 + $0x60] sm:$0xff] %vm256, %v252
    %270 = vst.msk [vmem:[%s3 + $0x68] sm:$0xff] %vm256, %v253
    %271 = vst.msk [vmem:[%s3 + $0x70] sm:$0xff] %vm256, %v254
    %272 = vst.msk [vmem:[%s3 + $0x78] sm:$0xff] %vm256, %v255
    // Predicated region
    $region22: #{conv_mae_forward.4} parent=1 // pred_check
      _
    $region23: #{conv_mae_forward.4} parent=1 // pred_check_branch
      %274 = sbr.rel (0) target = $region25
    $region24: #{conv_mae_forward.4} parent=1 // pred_region
      _
    $region25: #{conv_mae_forward.4} parent=1 // pred_fallthru
      _
    // Predicated region
    $region26: #{conv_mae_forward.4} parent=1 // pred_check
      _
    $region27: #{conv_mae_forward.4} parent=1 // pred_check_branch
      %276 = sbr.rel (0) target = $region29
    $region28: #{conv_mae_forward.4} parent=1 // pred_region
      _
    $region29: #{conv_mae_forward.4} parent=1 // pred_fallthru
      _
    %277 = vsyncpa [#allocation3], 1
    %278 = vsyncpa [#allocation5], 1

// kernel: conv_mae_forward.5
$region0: #{conv_mae_forward.5}
  #allocation0 [shape = 'u32[]', space=smem, size = 0x4, offset = 0x4, fixed_abs, tag = 'smem constant byte address 0x4 - core index']
  #allocation1 [shape = 'u32[144,128]{1,0:T(1,128)}', space=vmem, size = 0x12000, scoped, tag = 'internal scratch']
  %s0 = inlined_call_operand.vmem [shape: bf16[32,144], index: 0, kind: input, shape index: {}]
  %s1 = inlined_call_operand.vmem [shape: bf16[144,32], index: 1, kind: input, shape index: {}]
  %s2 = inlined_call_operand.hbm [shape: f32[1,32], index: 2, kind: input, shape index: {}]
  %s3 = inlined_call_operand.vmem [shape: f32[32,32], index: 3, kind: output, shape index: {}]
  %s4 = sld [smem:[#allocation0]]
  $region26: #{conv_mae_forward.5} parent=0
    _
  %s6 = ssub.s32 1, %s4
  %s7 = scalar_select 0, %s6, %s4
  $region1: #{conv_mae_forward.5} parent=0
    #allocation2 [shape = 'u8[512]{0}', space=vmem, size = 0x400, scoped, tag = 'input window, operand 2, single buffered']
    #allocation3 [shape = 's32[1]{0}', space=sflag, size = 0x4, scoped, tag = 'scoped memory for conv_mae_forward.5']
    %8 = vsyncpa [#allocation3], 0
    // Predicated region
    $region2: #{conv_mae_forward.5} parent=1 // pred_check
      _
    $region3: #{conv_mae_forward.5} parent=1 // pred_check_branch
      %10 = sbr.rel (0) target = $region5
    $region4: #{conv_mae_forward.5} parent=1 // pred_region
      _
    $region5: #{conv_mae_forward.5} parent=1 // pred_fallthru
      _
    // Predicated region
    $region6: #{conv_mae_forward.5} parent=1 // pred_check
      _
    $region7: #{conv_mae_forward.5} parent=1 // pred_check_branch
      %12 = sbr.rel (0) target = $region9
    $region8: #{conv_mae_forward.5} parent=1 // pred_region
      _
    $region9: #{conv_mae_forward.5} parent=1 // pred_fallthru
      _
    // Predicated region
    $region10: #{conv_mae_forward.5} parent=1 // pred_check
      _
    $region11: #{conv_mae_forward.5} parent=1 // pred_check_branch
      %14 = sbr.rel (0) target = $region13
    $region12: #{conv_mae_forward.5} parent=1 // pred_region
      %s16 = ssub.s32 16, 16
      %17 = vsyncadd [#allocation3], %s16
      %s19 = sshll.u32 [#allocation2], 4
      %s20 = int_to_ptr.vmem [resolvable:$true] %s19
      %22 = dma.hbm_to_vmem [thread:$0]  %s2, 16, %s20, [#allocation3]
    $region13: #{conv_mae_forward.5} parent=1 // pred_fallthru
      _
    // Predicated region
    $region14: #{conv_mae_forward.5} parent=1 // pred_check
      _
    $region15: #{conv_mae_forward.5} parent=1 // pred_check_branch
      %24 = sbr.rel (0) target = $region17
    $region16: #{conv_mae_forward.5} parent=1 // pred_region
      %25 = dma.done [#allocation3], 16
    $region17: #{conv_mae_forward.5} parent=1 // pred_fallthru
      _
    %v27 = vld [vmem:[%s0] sm:$0xff]
    %v28 = vld [vmem:[%s0 + $0x8] sm:$0xff]
    %v29 = vld [vmem:[%s0 + $0x10] sm:$0xff]
    %v30 = vld [vmem:[%s0 + $0x18] sm:$0xff]
    %v31 = vld [vmem:[%s1] sm:$0xf]
    %v32 = vld [vmem:[%s1 + $0x4] sm:$0xf]
    %v33 = vld [vmem:[%s1 + $0x8] sm:$0xf]
    %v34 = vld [vmem:[%s1 + $0xc] sm:$0xf]
    %v35 = vld [vmem:[%s1 + $0x10] sm:$0xf]
    %v36 = vld [vmem:[%s1 + $0x14] sm:$0xf]
    %v37 = vld [vmem:[%s1 + $0x18] sm:$0xf]
    %v38 = vld [vmem:[%s1 + $0x1c] sm:$0xf]
    %v39 = vld [vmem:[%s1 + $0x20] sm:$0xf]
    %v40 = vld [vmem:[%s1 + $0x24] sm:$0xf]
    %v41 = vld [vmem:[%s1 + $0x28] sm:$0xf]
    %v42 = vld [vmem:[%s1 + $0x2c] sm:$0xf]
    %v43 = vld [vmem:[%s1 + $0x30] sm:$0xf]
    %v44 = vld [vmem:[%s1 + $0x34] sm:$0xf]
    %v45 = vld [vmem:[%s1 + $0x38] sm:$0xf]
    %v46 = vld [vmem:[%s1 + $0x3c] sm:$0xf]
    %v47 = vld [vmem:[%s1 + $0x40] sm:$0xf]
    %v48 = vld [vmem:[%s1 + $0x44] sm:$0xf]
    %v49 = vld [vmem:[#allocation2] sm:$0x1]
    %v51 = vlaneseq
    %v52 = vshrl.u32 %v51, 7
    %v53 = vsub.s32 0, %v52
    %v54 = vrot.slane %v49, %v53
    %v60 = vunpack.c.l.b16 %v27
    %v61 = vunpack.c.h.b16 %v27
    %v62 = vunpack.c.l.b16 %v28
    %v63 = vunpack.c.h.b16 %v28
    %v64 = vunpack.c.l.b16 %v29
    %v65 = vunpack.c.h.b16 %v29
    %v66 = vunpack.c.l.b16 %v30
    %v67 = vunpack.c.h.b16 %v30
    %v68 = vpack.c.b16 %v62, %v60
    %v69 = vpack.c.b16 %v63, %v61
    %v70 = vpack.c.b16 %v66, %v64
    %v71 = vpack.c.b16 %v67, %v65
    %v92 = vunpack.c.l.b16 %v31
    %v93 = vunpack.c.l.b16 %v32
    %v94 = vunpack.c.l.b16 %v33
    %v95 = vunpack.c.l.b16 %v34
    %v96 = vunpack.c.l.b16 %v35
    %v97 = vunpack.c.l.b16 %v36
    %v98 = vunpack.c.l.b16 %v37
    %v99 = vunpack.c.l.b16 %v38
    %v100 = vunpack.c.l.b16 %v39
    %v101 = vunpack.c.l.b16 %v40
    %v102 = vunpack.c.l.b16 %v41
    %v103 = vunpack.c.l.b16 %v42
    %v104 = vunpack.c.l.b16 %v43
    %v105 = vunpack.c.l.b16 %v44
    %v106 = vunpack.c.l.b16 %v45
    %v107 = vunpack.c.l.b16 %v46
    %v108 = vunpack.c.l.b16 %v47
    %v109 = vunpack.c.l.b16 %v48
    %v110 = vpack.c.b16 %v93, %v92
    %v111 = vpack.c.b16 %v95, %v94
    %v112 = vpack.c.b16 %v97, %v96
    %v113 = vpack.c.b16 %v99, %v98
    %v114 = vpack.c.b16 %v101, %v100
    %v115 = vpack.c.b16 %v103, %v102
    %v116 = vpack.c.b16 %v105, %v104
    %v117 = vpack.c.b16 %v107, %v106
    %v118 = vpack.c.b16 %v109, %v108
    %vm128 = vcmask 130048
    %v130 = vsel %vm128, %v69, 0
    %v133 = vsel %vm128, %v71, 0
    %135 = vmatprep.subr.bf16.mxu0 0
    %136 = vmatpush1.bf16.msra.mxu0 %v117
    %137 = vmatprep.subr.bf16.mxu0 0
    %138 = vmatpush1.bf16.msra.mxu0 %v116
    %139 = vmatprep.subr.bf16.mxu0 0
    %140 = vmatpush1.bf16.msra.mxu0 %v115
    %141 = vmatprep.subr.bf16.mxu0 0
    %142 = vmatpush1.bf16.msra.mxu0 %v114
    %143 = vmatprep.subr.bf16.mxu0 0
    %144 = vmatpush1.bf16.msra.mxu0 %v113
    %145 = vmatprep.subr.bf16.mxu0 0
    %146 = vmatpush1.bf16.msra.mxu0 %v112
    %147 = vmatprep.subr.bf16.mxu0 0
    %148 = vmatpush1.bf16.msra.mxu0 %v111
    %149 = vmatprep.subr.bf16.mxu0 0
    %150 = vmatpush1.bf16.msra.mxu0 %v110
    %151 = vmatprep.subr.bf16.mxu0 0
    %152 = vmatpush2.bf16.msra.mxu0 0
    %153 = vmatprep.subr.bf16.mxu0 0
    %154 = vmatpush2.bf16.msra.mxu0 0
    %155 = vmatprep.subr.bf16.mxu0 0
    %156 = vmatpush2.bf16.msra.mxu0 0
    %157 = vmatprep.subr.bf16.mxu0 0
    %158 = vmatpush2.bf16.msra.mxu0 0
    %159 = vmatprep.subr.bf16.mxu0 0
    %160 = vmatpush2.bf16.msra.mxu0 0
    %161 = vmatprep.subr.bf16.mxu0 0
    %162 = vmatpush2.bf16.msra.mxu0 0
    %163 = vmatprep.subr.bf16.mxu0 0
    %164 = vmatpush2.bf16.msra.mxu0 0
    %165 = vmatprep.subr.bf16.mxu0 0
    %166 = vmatpush2.bf16.msra.mxu0 %v118
    %167 = vmatprep.mubr.bf16.mxu0 %v130
    %168 = vmatmul.mubr.bf16.gmra.mxu0 %v68
    %v169 = vpop.f32.mrf.mxu0
    %v170 = vadd.f32 %v54, %v169
    %v171 = vpop.f32.mrf.mxu0
    %v172 = vpop.f32.mrf.mxu0
    %v173 = vadd.f32 %v54, %v172
    %v174 = vpop.f32.mrf.mxu0
    %175 = vmatprep.mubr.bf16.mxu0 %v133
    %176 = vmatmul.mubr.bf16.gmra.mxu0 %v70
    %v177 = vpop.f32.mrf.mxu0
    %v178 = vadd.f32 %v54, %v177
    %v179 = vpop.f32.mrf.mxu0
    %v180 = vpop.f32.mrf.mxu0
    %v181 = vadd.f32 %v54, %v180
    %v182 = vpop.f32.mrf.mxu0
    %183 = vdwg.mxu0
    %v184 = vmax.f32 %v170, 0.0
    %v185 = vmax.f32 %v173, 0.0
    %v186 = vmax.f32 %v178, 0.0
    %v187 = vmax.f32 %v181, 0.0
    %vm188 = vcmask 261120
    %189 = vst.msk [vmem:[%s3] sm:$0xff] %vm188, %v184
    %190 = vst.msk [vmem:[%s3 + $0x8] sm:$0xff] %vm188, %v185
    %191 = vst.msk [vmem:[%s3 + $0x10] sm:$0xff] %vm188, %v186
    %192 = vst.msk [vmem:[%s3 + $0x18] sm:$0xff] %vm188, %v187
    // Predicated region
    $region18: #{conv_mae_forward.5} parent=1 // pred_check
      _
    $region19: #{conv_mae_forward.5} parent=1 // pred_check_branch
      %194 = sbr.rel (0) target = $region21
    $region20: #{conv_mae_forward.5} parent=1 // pred_region
      _
    $region21: #{conv_mae_forward.5} parent=1 // pred_fallthru
      _
    // Predicated region
    $region22: #{conv_mae_forward.5} parent=1 // pred_check
      _
    $region23: #{conv_mae_forward.5} parent=1 // pred_check_branch
      %196 = sbr.rel (0) target = $region25
    $region24: #{conv_mae_forward.5} parent=1 // pred_region
      _
    $region25: #{conv_mae_forward.5} parent=1 // pred_fallthru
      _
    %197 = vsyncpa [#allocation3], 1

// kernel: conv_mae_forward.6
$region0: #{conv_mae_forward.6}
  #allocation0 [shape = 'u32[]', space=smem, size = 0x4, offset = 0x4, fixed_abs, tag = 'smem constant byte address 0x4 - core index']
  #allocation1 [shape = 'u32[144,128]{1,0:T(1,128)}', space=vmem, size = 0x12000, scoped, tag = 'internal scratch']
  %s0 = inlined_call_operand.vmem [shape: bf16[128,512], index: 0, kind: input, shape index: {}]
  %s1 = inlined_call_operand.vmem [shape: bf16[512,16], index: 1, kind: input, shape index: {}]
  %s2 = inlined_call_operand.vmem [shape: f32[1,16], index: 2, kind: input, shape index: {}]
  %s3 = inlined_call_operand.vmem [shape: f32[128,16], index: 3, kind: output, shape index: {}]
  %s4 = sld [smem:[#allocation0]]
  $region22: #{conv_mae_forward.6} parent=0
    _
  %s6 = ssub.s32 1, %s4
  %s7 = scalar_select 0, %s6, %s4
  // Predicated region
  $region2: #{conv_mae_forward.6} parent=0 // pred_check
    _
  $region3: #{conv_mae_forward.6} parent=0 // pred_check_branch
    %9 = sbr.rel (0) target = $region5
  $region4: #{conv_mae_forward.6} parent=0 // pred_region
    _
  $region5: #{conv_mae_forward.6} parent=0 // pred_fallthru
    _
  // Predicated region
  $region6: #{conv_mae_forward.6} parent=0 // pred_check
    _
  $region7: #{conv_mae_forward.6} parent=0 // pred_check_branch
    %11 = sbr.rel (0) target = $region9
  $region8: #{conv_mae_forward.6} parent=0 // pred_region
    _
  $region9: #{conv_mae_forward.6} parent=0 // pred_fallthru
    _
  // Predicated region
  $region10: #{conv_mae_forward.6} parent=0 // pred_check
    _
  $region11: #{conv_mae_forward.6} parent=0 // pred_check_branch
    %13 = sbr.rel (0) target = $region13
  $region12: #{conv_mae_forward.6} parent=0 // pred_region
    _
  $region13: #{conv_mae_forward.6} parent=0 // pred_fallthru
    _
  %v15 = vld [vmem:[%s0] sm:$0xff]
  %v16 = vld [vmem:[%s0 + $0x8] sm:$0xff]
  %v17 = vld [vmem:[%s0 + $0x10] sm:$0xff]
  %v18 = vld [vmem:[%s0 + $0x18] sm:$0xff]
  %v19 = vld [vmem:[%s0 + $0x20] sm:$0xff]
  %v20 = vld [vmem:[%s0 + $0x28] sm:$0xff]
  %v21 = vld [vmem:[%s0 + $0x30] sm:$0xff]
  %v22 = vld [vmem:[%s0 + $0x38] sm:$0xff]
  %v23 = vld [vmem:[%s0 + $0x40] sm:$0xff]
  %v24 = vld [vmem:[%s0 + $0x48] sm:$0xff]
  %v25 = vld [vmem:[%s0 + $0x50] sm:$0xff]
  %v26 = vld [vmem:[%s0 + $0x58] sm:$0xff]
  %v27 = vld [vmem:[%s0 + $0x60] sm:$0xff]
  %v28 = vld [vmem:[%s0 + $0x68] sm:$0xff]
  %v29 = vld [vmem:[%s0 + $0x70] sm:$0xff]
  %v30 = vld [vmem:[%s0 + $0x78] sm:$0xff]
  %v31 = vld [vmem:[%s0 + $0x80] sm:$0xff]
  %v32 = vld [vmem:[%s0 + $0x88] sm:$0xff]
  %v33 = vld [vmem:[%s0 + $0x90] sm:$0xff]
  %v34 = vld [vmem:[%s0 + $0x98] sm:$0xff]
  %v35 = vld [vmem:[%s0 + $0xa0] sm:$0xff]
  %v36 = vld [vmem:[%s0 + $0xa8] sm:$0xff]
  %v37 = vld [vmem:[%s0 + $0xb0] sm:$0xff]
  %v38 = vld [vmem:[%s0 + $0xb8] sm:$0xff]
  %v39 = vld [vmem:[%s0 + $0xc0] sm:$0xff]
  %v40 = vld [vmem:[%s0 + $0xc8] sm:$0xff]
  %v41 = vld [vmem:[%s0 + $0xd0] sm:$0xff]
  %v42 = vld [vmem:[%s0 + $0xd8] sm:$0xff]
  %v43 = vld [vmem:[%s0 + $0xe0] sm:$0xff]
  %v44 = vld [vmem:[%s0 + $0xe8] sm:$0xff]
  %v45 = vld [vmem:[%s0 + $0xf0] sm:$0xff]
  %v46 = vld [vmem:[%s0 + $0xf8] sm:$0xff]
  %v47 = vld [vmem:[%s1] sm:$0xf]
  %v48 = vld [vmem:[%s1 + $0x4] sm:$0xf]
  %v49 = vld [vmem:[%s1 + $0x8] sm:$0xf]
  %v50 = vld [vmem:[%s1 + $0xc] sm:$0xf]
  %v51 = vld [vmem:[%s1 + $0x10] sm:$0xf]
  %v52 = vld [vmem:[%s1 + $0x14] sm:$0xf]
  %v53 = vld [vmem:[%s1 + $0x18] sm:$0xf]
  %v54 = vld [vmem:[%s1 + $0x1c] sm:$0xf]
  %v55 = vld [vmem:[%s1 + $0x20] sm:$0xf]
  %v56 = vld [vmem:[%s1 + $0x24] sm:$0xf]
  %v57 = vld [vmem:[%s1 + $0x28] sm:$0xf]
  %v58 = vld [vmem:[%s1 + $0x2c] sm:$0xf]
  %v59 = vld [vmem:[%s1 + $0x30] sm:$0xf]
  %v60 = vld [vmem:[%s1 + $0x34] sm:$0xf]
  %v61 = vld [vmem:[%s1 + $0x38] sm:$0xf]
  %v62 = vld [vmem:[%s1 + $0x3c] sm:$0xf]
  %v63 = vld [vmem:[%s1 + $0x40] sm:$0xf]
  %v64 = vld [vmem:[%s1 + $0x44] sm:$0xf]
  %v65 = vld [vmem:[%s1 + $0x48] sm:$0xf]
  %v66 = vld [vmem:[%s1 + $0x4c] sm:$0xf]
  %v67 = vld [vmem:[%s1 + $0x50] sm:$0xf]
  %v68 = vld [vmem:[%s1 + $0x54] sm:$0xf]
  %v69 = vld [vmem:[%s1 + $0x58] sm:$0xf]
  %v70 = vld [vmem:[%s1 + $0x5c] sm:$0xf]
  %v71 = vld [vmem:[%s1 + $0x60] sm:$0xf]
  %v72 = vld [vmem:[%s1 + $0x64] sm:$0xf]
  %v73 = vld [vmem:[%s1 + $0x68] sm:$0xf]
  %v74 = vld [vmem:[%s1 + $0x6c] sm:$0xf]
  %v75 = vld [vmem:[%s1 + $0x70] sm:$0xf]
  %v76 = vld [vmem:[%s1 + $0x74] sm:$0xf]
  %v77 = vld [vmem:[%s1 + $0x78] sm:$0xf]
  %v78 = vld [vmem:[%s1 + $0x7c] sm:$0xf]
  %v79 = vld [vmem:[%s1 + $0x80] sm:$0xf]
  %v80 = vld [vmem:[%s1 + $0x84] sm:$0xf]
  %v81 = vld [vmem:[%s1 + $0x88] sm:$0xf]
  %v82 = vld [vmem:[%s1 + $0x8c] sm:$0xf]
  %v83 = vld [vmem:[%s1 + $0x90] sm:$0xf]
  %v84 = vld [vmem:[%s1 + $0x94] sm:$0xf]
  %v85 = vld [vmem:[%s1 + $0x98] sm:$0xf]
  %v86 = vld [vmem:[%s1 + $0x9c] sm:$0xf]
  %v87 = vld [vmem:[%s1 + $0xa0] sm:$0xf]
  %v88 = vld [vmem:[%s1 + $0xa4] sm:$0xf]
  %v89 = vld [vmem:[%s1 + $0xa8] sm:$0xf]
  %v90 = vld [vmem:[%s1 + $0xac] sm:$0xf]
  %v91 = vld [vmem:[%s1 + $0xb0] sm:$0xf]
  %v92 = vld [vmem:[%s1 + $0xb4] sm:$0xf]
  %v93 = vld [vmem:[%s1 + $0xb8] sm:$0xf]
  %v94 = vld [vmem:[%s1 + $0xbc] sm:$0xf]
  %v95 = vld [vmem:[%s1 + $0xc0] sm:$0xf]
  %v96 = vld [vmem:[%s1 + $0xc4] sm:$0xf]
  %v97 = vld [vmem:[%s1 + $0xc8] sm:$0xf]
  %v98 = vld [vmem:[%s1 + $0xcc] sm:$0xf]
  %v99 = vld [vmem:[%s1 + $0xd0] sm:$0xf]
  %v100 = vld [vmem:[%s1 + $0xd4] sm:$0xf]
  %v101 = vld [vmem:[%s1 + $0xd8] sm:$0xf]
  %v102 = vld [vmem:[%s1 + $0xdc] sm:$0xf]
  %v103 = vld [vmem:[%s1 + $0xe0] sm:$0xf]
  %v104 = vld [vmem:[%s1 + $0xe4] sm:$0xf]
  %v105 = vld [vmem:[%s1 + $0xe8] sm:$0xf]
  %v106 = vld [vmem:[%s1 + $0xec] sm:$0xf]
  %v107 = vld [vmem:[%s1 + $0xf0] sm:$0xf]
  %v108 = vld [vmem:[%s1 + $0xf4] sm:$0xf]
  %v109 = vld [vmem:[%s1 + $0xf8] sm:$0xf]
  %v110 = vld [vmem:[%s1 + $0xfc] sm:$0xf]
  %v111 = vld [vmem:[%s2] sm:$0x1]
  %v113 = vlaneseq
  %v114 = vshrl.u32 %v113, 7
  %v115 = vsub.s32 0, %v114
  %v116 = vrot.slane %v111, %v115
  %v150 = vunpack.c.l.b16 %v15
  %v151 = vunpack.c.h.b16 %v15
  %v152 = vunpack.c.l.b16 %v16
  %v153 = vunpack.c.h.b16 %v16
  %v154 = vunpack.c.l.b16 %v17
  %v155 = vunpack.c.h.b16 %v17
  %v156 = vunpack.c.l.b16 %v18
  %v157 = vunpack.c.h.b16 %v18
  %v158 = vunpack.c.l.b16 %v19
  %v159 = vunpack.c.h.b16 %v19
  %v160 = vunpack.c.l.b16 %v20
  %v161 = vunpack.c.h.b16 %v20
  %v162 = vunpack.c.l.b16 %v21
  %v163 = vunpack.c.h.b16 %v21
  %v164 = vunpack.c.l.b16 %v22
  %v165 = vunpack.c.h.b16 %v22
  %v166 = vunpack.c.l.b16 %v23
  %v167 = vunpack.c.h.b16 %v23
  %v168 = vunpack.c.l.b16 %v24
  %v169 = vunpack.c.h.b16 %v24
  %v170 = vunpack.c.l.b16 %v25
  %v171 = vunpack.c.h.b16 %v25
  %v172 = vunpack.c.l.b16 %v26
  %v173 = vunpack.c.h.b16 %v26
  %v174 = vunpack.c.l.b16 %v27
  %v175 = vunpack.c.h.b16 %v27
  %v176 = vunpack.c.l.b16 %v28
  %v177 = vunpack.c.h.b16 %v28
  %v178 = vunpack.c.l.b16 %v29
  %v179 = vunpack.c.h.b16 %v29
  %v180 = vunpack.c.l.b16 %v30
  %v181 = vunpack.c.h.b16 %v30
  %v182 = vunpack.c.l.b16 %v31
  %v183 = vunpack.c.h.b16 %v31
  %v184 = vunpack.c.l.b16 %v32
  %v185 = vunpack.c.h.b16 %v32
  %v186 = vunpack.c.l.b16 %v33
  %v187 = vunpack.c.h.b16 %v33
  %v188 = vunpack.c.l.b16 %v34
  %v189 = vunpack.c.h.b16 %v34
  %v190 = vunpack.c.l.b16 %v35
  %v191 = vunpack.c.h.b16 %v35
  %v192 = vunpack.c.l.b16 %v36
  %v193 = vunpack.c.h.b16 %v36
  %v194 = vunpack.c.l.b16 %v37
  %v195 = vunpack.c.h.b16 %v37
  %v196 = vunpack.c.l.b16 %v38
  %v197 = vunpack.c.h.b16 %v38
  %v198 = vunpack.c.l.b16 %v39
  %v199 = vunpack.c.h.b16 %v39
  %v200 = vunpack.c.l.b16 %v40
  %v201 = vunpack.c.h.b16 %v40
  %v202 = vunpack.c.l.b16 %v41
  %v203 = vunpack.c.h.b16 %v41
  %v204 = vunpack.c.l.b16 %v42
  %v205 = vunpack.c.h.b16 %v42
  %v206 = vunpack.c.l.b16 %v43
  %v207 = vunpack.c.h.b16 %v43
  %v208 = vunpack.c.l.b16 %v44
  %v209 = vunpack.c.h.b16 %v44
  %v210 = vunpack.c.l.b16 %v45
  %v211 = vunpack.c.h.b16 %v45
  %v212 = vunpack.c.l.b16 %v46
  %v213 = vunpack.c.h.b16 %v46
  %v214 = vpack.c.b16 %v154, %v150
  %v215 = vpack.c.b16 %v155, %v151
  %v216 = vpack.c.b16 %v156, %v152
  %v217 = vpack.c.b16 %v157, %v153
  %v218 = vpack.c.b16 %v162, %v158
  %v219 = vpack.c.b16 %v163, %v159
  %v220 = vpack.c.b16 %v164, %v160
  %v221 = vpack.c.b16 %v165, %v161
  %v222 = vpack.c.b16 %v170, %v166
  %v223 = vpack.c.b16 %v171, %v167
  %v224 = vpack.c.b16 %v172, %v168
  %v225 = vpack.c.b16 %v173, %v169
  %v226 = vpack.c.b16 %v178, %v174
  %v227 = vpack.c.b16 %v179, %v175
  %v228 = vpack.c.b16 %v180, %v176
  %v229 = vpack.c.b16 %v181, %v177
  %v230 = vpack.c.b16 %v186, %v182
  %v231 = vpack.c.b16 %v187, %v183
  %v232 = vpack.c.b16 %v188, %v184
  %v233 = vpack.c.b16 %v189, %v185
  %v234 = vpack.c.b16 %v194, %v190
  %v235 = vpack.c.b16 %v195, %v191
  %v236 = vpack.c.b16 %v196, %v192
  %v237 = vpack.c.b16 %v197, %v193
  %v238 = vpack.c.b16 %v202, %v198
  %v239 = vpack.c.b16 %v203, %v199
  %v240 = vpack.c.b16 %v204, %v200
  %v241 = vpack.c.b16 %v205, %v201
  %v242 = vpack.c.b16 %v210, %v206
  %v243 = vpack.c.b16 %v211, %v207
  %v244 = vpack.c.b16 %v212, %v208
  %v245 = vpack.c.b16 %v213, %v209
  %v342 = vunpack.c.l.b16 %v47
  %v343 = vunpack.c.l.b16 %v48
  %v344 = vunpack.c.l.b16 %v49
  %v345 = vunpack.c.l.b16 %v50
  %v346 = vunpack.c.l.b16 %v51
  %v347 = vunpack.c.l.b16 %v52
  %v348 = vunpack.c.l.b16 %v53
  %v349 = vunpack.c.l.b16 %v54
  %v350 = vunpack.c.l.b16 %v55
  %v351 = vunpack.c.l.b16 %v56
  %v352 = vunpack.c.l.b16 %v57
  %v353 = vunpack.c.l.b16 %v58
  %v354 = vunpack.c.l.b16 %v59
  %v355 = vunpack.c.l.b16 %v60
  %v356 = vunpack.c.l.b16 %v61
  %v357 = vunpack.c.l.b16 %v62
  %v358 = vunpack.c.l.b16 %v63
  %v359 = vunpack.c.l.b16 %v64
  %v360 = vunpack.c.l.b16 %v65
  %v361 = vunpack.c.l.b16 %v66
  %v362 = vunpack.c.l.b16 %v67
  %v363 = vunpack.c.l.b16 %v68
  %v364 = vunpack.c.l.b16 %v69
  %v365 = vunpack.c.l.b16 %v70
  %v366 = vunpack.c.l.b16 %v71
  %v367 = vunpack.c.l.b16 %v72
  %v368 = vunpack.c.l.b16 %v73
  %v369 = vunpack.c.l.b16 %v74
  %v370 = vunpack.c.l.b16 %v75
  %v371 = vunpack.c.l.b16 %v76
  %v372 = vunpack.c.l.b16 %v77
  %v373 = vunpack.c.l.b16 %v78
  %v374 = vunpack.c.l.b16 %v79
  %v375 = vunpack.c.l.b16 %v80
  %v376 = vunpack.c.l.b16 %v81
  %v377 = vunpack.c.l.b16 %v82
  %v378 = vunpack.c.l.b16 %v83
  %v379 = vunpack.c.l.b16 %v84
  %v380 = vunpack.c.l.b16 %v85
  %v381 = vunpack.c.l.b16 %v86
  %v382 = vunpack.c.l.b16 %v87
  %v383 = vunpack.c.l.b16 %v88
  %v384 = vunpack.c.l.b16 %v89
  %v385 = vunpack.c.l.b16 %v90
  %v386 = vunpack.c.l.b16 %v91
  %v387 = vunpack.c.l.b16 %v92
  %v388 = vunpack.c.l.b16 %v93
  %v389 = vunpack.c.l.b16 %v94
  %v390 = vunpack.c.l.b16 %v95
  %v391 = vunpack.c.l.b16 %v96
  %v392 = vunpack.c.l.b16 %v97
  %v393 = vunpack.c.l.b16 %v98
  %v394 = vunpack.c.l.b16 %v99
  %v395 = vunpack.c.l.b16 %v100
  %v396 = vunpack.c.l.b16 %v101
  %v397 = vunpack.c.l.b16 %v102
  %v398 = vunpack.c.l.b16 %v103
  %v399 = vunpack.c.l.b16 %v104
  %v400 = vunpack.c.l.b16 %v105
  %v401 = vunpack.c.l.b16 %v106
  %v402 = vunpack.c.l.b16 %v107
  %v403 = vunpack.c.l.b16 %v108
  %v404 = vunpack.c.l.b16 %v109
  %v405 = vunpack.c.l.b16 %v110
  %v406 = vpack.c.b16 %v343, %v342
  %v407 = vpack.c.b16 %v345, %v344
  %v408 = vpack.c.b16 %v347, %v346
  %v409 = vpack.c.b16 %v349, %v348
  %v410 = vpack.c.b16 %v351, %v350
  %v411 = vpack.c.b16 %v353, %v352
  %v412 = vpack.c.b16 %v355, %v354
  %v413 = vpack.c.b16 %v357, %v356
  %v414 = vpack.c.b16 %v359, %v358
  %v415 = vpack.c.b16 %v361, %v360
  %v416 = vpack.c.b16 %v363, %v362
  %v417 = vpack.c.b16 %v365, %v364
  %v418 = vpack.c.b16 %v367, %v366
  %v419 = vpack.c.b16 %v369, %v368
  %v420 = vpack.c.b16 %v371, %v370
  %v421 = vpack.c.b16 %v373, %v372
  %v422 = vpack.c.b16 %v375, %v374
  %v423 = vpack.c.b16 %v377, %v376
  %v424 = vpack.c.b16 %v379, %v378
  %v425 = vpack.c.b16 %v381, %v380
  %v426 = vpack.c.b16 %v383, %v382
  %v427 = vpack.c.b16 %v385, %v384
  %v428 = vpack.c.b16 %v387, %v386
  %v429 = vpack.c.b16 %v389, %v388
  %v430 = vpack.c.b16 %v391, %v390
  %v431 = vpack.c.b16 %v393, %v392
  %v432 = vpack.c.b16 %v395, %v394
  %v433 = vpack.c.b16 %v397, %v396
  %v434 = vpack.c.b16 %v399, %v398
  %v435 = vpack.c.b16 %v401, %v400
  %v436 = vpack.c.b16 %v403, %v402
  %v437 = vpack.c.b16 %v405, %v404
  %470 = vmatprep.subr.bf16.mxu0 0
  %471 = vmatpush1.bf16.msra.mxu0 %v413
  %472 = vmatprep.subr.bf16.mxu0 0
  %473 = vmatpush1.bf16.msra.mxu0 %v412
  %474 = vmatprep.subr.bf16.mxu0 0
  %475 = vmatpush1.bf16.msra.mxu0 %v411
  %476 = vmatprep.subr.bf16.mxu0 0
  %477 = vmatpush1.bf16.msra.mxu0 %v410
  %478 = vmatprep.subr.bf16.mxu0 0
  %479 = vmatpush1.bf16.msra.mxu0 %v409
  %480 = vmatprep.subr.bf16.mxu0 0
  %481 = vmatpush1.bf16.msra.mxu0 %v408
  %482 = vmatprep.subr.bf16.mxu0 0
  %483 = vmatpush1.bf16.msra.mxu0 %v407
  %484 = vmatprep.subr.bf16.mxu0 0
  %485 = vmatpush1.bf16.msra.mxu0 %v406
  %486 = vmatprep.subr.bf16.mxu0 0
  %487 = vmatpush2.bf16.msra.mxu0 %v421
  %488 = vmatprep.subr.bf16.mxu0 0
  %489 = vmatpush2.bf16.msra.mxu0 %v420
  %490 = vmatprep.subr.bf16.mxu0 0
  %491 = vmatpush2.bf16.msra.mxu0 %v419
  %492 = vmatprep.subr.bf16.mxu0 0
  %493 = vmatpush2.bf16.msra.mxu0 %v418
  %494 = vmatprep.subr.bf16.mxu0 0
  %495 = vmatpush2.bf16.msra.mxu0 %v417
  %496 = vmatprep.subr.bf16.mxu0 0
  %497 = vmatpush2.bf16.msra.mxu0 %v416
  %498 = vmatprep.subr.bf16.mxu0 0
  %499 = vmatpush2.bf16.msra.mxu0 %v415
  %500 = vmatprep.subr.bf16.mxu0 0
  %501 = vmatpush2.bf16.msra.mxu0 %v414
  %502 = vmatprep.mubr.bf16.mxu0 %v215
  %503 = vmatmul.mubr.bf16.gmra.mxu0 %v214
  %v504 = vpop.f32.mrf.mxu0
  %v505 = vadd.f32 %v116, %v504
  %v506 = vpop.f32.mrf.mxu0
  %v507 = vpop.f32.mrf.mxu0
  %v508 = vadd.f32 %v116, %v507
  %v509 = vpop.f32.mrf.mxu0
  %510 = vmatprep.mubr.bf16.mxu0 %v219
  %511 = vmatmul.mubr.bf16.gmra.mxu0 %v218
  %v512 = vpop.f32.mrf.mxu0
  %v513 = vadd.f32 %v116, %v512
  %v514 = vpop.f32.mrf.mxu0
  %v515 = vpop.f32.mrf.mxu0
  %v516 = vadd.f32 %v116, %v515
  %v517 = vpop.f32.mrf.mxu0
  %518 = vmatprep.mubr.bf16.mxu0 %v223
  %519 = vmatmul.mubr.bf16.gmra.mxu0 %v222
  %v520 = vpop.f32.mrf.mxu0
  %v521 = vadd.f32 %v116, %v520
  %v522 = vpop.f32.mrf.mxu0
  %v523 = vpop.f32.mrf.mxu0
  %v524 = vadd.f32 %v116, %v523
  %v525 = vpop.f32.mrf.mxu0
  %526 = vmatprep.mubr.bf16.mxu0 %v227
  %527 = vmatmul.mubr.bf16.gmra.mxu0 %v226
  %v528 = vpop.f32.mrf.mxu0
  %v529 = vadd.f32 %v116, %v528
  %v530 = vpop.f32.mrf.mxu0
  %v531 = vpop.f32.mrf.mxu0
  %v532 = vadd.f32 %v116, %v531
  %v533 = vpop.f32.mrf.mxu0
  %534 = vmatprep.mubr.bf16.mxu0 %v231
  %535 = vmatmul.mubr.bf16.gmra.mxu0 %v230
  %v536 = vpop.f32.mrf.mxu0
  %v537 = vadd.f32 %v116, %v536
  %v538 = vpop.f32.mrf.mxu0
  %v539 = vpop.f32.mrf.mxu0
  %v540 = vadd.f32 %v116, %v539
  %v541 = vpop.f32.mrf.mxu0
  %542 = vmatprep.mubr.bf16.mxu0 %v235
  %543 = vmatmul.mubr.bf16.gmra.mxu0 %v234
  %v544 = vpop.f32.mrf.mxu0
  %v545 = vadd.f32 %v116, %v544
  %v546 = vpop.f32.mrf.mxu0
  %v547 = vpop.f32.mrf.mxu0
  %v548 = vadd.f32 %v116, %v547
  %v549 = vpop.f32.mrf.mxu0
  %550 = vmatprep.mubr.bf16.mxu0 %v239
  %551 = vmatmul.mubr.bf16.gmra.mxu0 %v238
  %v552 = vpop.f32.mrf.mxu0
  %v553 = vadd.f32 %v116, %v552
  %v554 = vpop.f32.mrf.mxu0
  %v555 = vpop.f32.mrf.mxu0
  %v556 = vadd.f32 %v116, %v555
  %v557 = vpop.f32.mrf.mxu0
  %558 = vmatprep.mubr.bf16.mxu0 %v243
  %559 = vmatmul.mubr.bf16.gmra.mxu0 %v242
  %v560 = vpop.f32.mrf.mxu0
  %v561 = vadd.f32 %v116, %v560
  %v562 = vpop.f32.mrf.mxu0
  %v563 = vpop.f32.mrf.mxu0
  %v564 = vadd.f32 %v116, %v563
  %v565 = vpop.f32.mrf.mxu0
  %566 = vdwg.mxu0
  %567 = vmatprep.subr.bf16.mxu0 0
  %568 = vmatpush1.bf16.msra.mxu0 %v429
  %569 = vmatprep.subr.bf16.mxu0 0
  %570 = vmatpush1.bf16.msra.mxu0 %v428
  %571 = vmatprep.subr.bf16.mxu0 0
  %572 = vmatpush1.bf16.msra.mxu0 %v427
  %573 = vmatprep.subr.bf16.mxu0 0
  %574 = vmatpush1.bf16.msra.mxu0 %v426
  %575 = vmatprep.subr.bf16.mxu0 0
  %576 = vmatpush1.bf16.msra.mxu0 %v425
  %577 = vmatprep.subr.bf16.mxu0 0
  %578 = vmatpush1.bf16.msra.mxu0 %v424
  %579 = vmatprep.subr.bf16.mxu0 0
  %580 = vmatpush1.bf16.msra.mxu0 %v423
  %581 = vmatprep.subr.bf16.mxu0 0
  %582 = vmatpush1.bf16.msra.mxu0 %v422
  %583 = vmatprep.subr.bf16.mxu0 0
  %584 = vmatpush2.bf16.msra.mxu0 %v437
  %585 = vmatprep.subr.bf16.mxu0 0
  %586 = vmatpush2.bf16.msra.mxu0 %v436
  %587 = vmatprep.subr.bf16.mxu0 0
  %588 = vmatpush2.bf16.msra.mxu0 %v435
  %589 = vmatprep.subr.bf16.mxu0 0
  %590 = vmatpush2.bf16.msra.mxu0 %v434
  %591 = vmatprep.subr.bf16.mxu0 0
  %592 = vmatpush2.bf16.msra.mxu0 %v433
  %593 = vmatprep.subr.bf16.mxu0 0
  %594 = vmatpush2.bf16.msra.mxu0 %v432
  %595 = vmatprep.subr.bf16.mxu0 0
  %596 = vmatpush2.bf16.msra.mxu0 %v431
  %597 = vmatprep.subr.bf16.mxu0 0
  %598 = vmatpush2.bf16.msra.mxu0 %v430
  %599 = vmatprep.mubr.bf16.mxu0 %v217
  %600 = vmatmul.mubr.bf16.gmra.mxu0 %v216
  %v601 = vpop.f32.mrf.mxu0
  %v602 = vadd.f32 %v505, %v601
  %v603 = vpop.f32.mrf.mxu0
  %v604 = vpop.f32.mrf.mxu0
  %v605 = vadd.f32 %v508, %v604
  %v606 = vpop.f32.mrf.mxu0
  %607 = vmatprep.mubr.bf16.mxu0 %v221
  %608 = vmatmul.mubr.bf16.gmra.mxu0 %v220
  %v609 = vpop.f32.mrf.mxu0
  %v610 = vadd.f32 %v513, %v609
  %v611 = vpop.f32.mrf.mxu0
  %v612 = vpop.f32.mrf.mxu0
  %v613 = vadd.f32 %v516, %v612
  %v614 = vpop.f32.mrf.mxu0
  %615 = vmatprep.mubr.bf16.mxu0 %v225
  %616 = vmatmul.mubr.bf16.gmra.mxu0 %v224
  %v617 = vpop.f32.mrf.mxu0
  %v618 = vadd.f32 %v521, %v617
  %v619 = vpop.f32.mrf.mxu0
  %v620 = vpop.f32.mrf.mxu0
  %v621 = vadd.f32 %v524, %v620
  %v622 = vpop.f32.mrf.mxu0
  %623 = vmatprep.mubr.bf16.mxu0 %v229
  %624 = vmatmul.mubr.bf16.gmra.mxu0 %v228
  %v625 = vpop.f32.mrf.mxu0
  %v626 = vadd.f32 %v529, %v625
  %v627 = vpop.f32.mrf.mxu0
  %v628 = vpop.f32.mrf.mxu0
  %v629 = vadd.f32 %v532, %v628
  %v630 = vpop.f32.mrf.mxu0
  %631 = vmatprep.mubr.bf16.mxu0 %v233
  %632 = vmatmul.mubr.bf16.gmra.mxu0 %v232
  %v633 = vpop.f32.mrf.mxu0
  %v634 = vadd.f32 %v537, %v633
  %v635 = vpop.f32.mrf.mxu0
  %v636 = vpop.f32.mrf.mxu0
  %v637 = vadd.f32 %v540, %v636
  %v638 = vpop.f32.mrf.mxu0
  %639 = vmatprep.mubr.bf16.mxu0 %v237
  %640 = vmatmul.mubr.bf16.gmra.mxu0 %v236
  %v641 = vpop.f32.mrf.mxu0
  %v642 = vadd.f32 %v545, %v641
  %v643 = vpop.f32.mrf.mxu0
  %v644 = vpop.f32.mrf.mxu0
  %v645 = vadd.f32 %v548, %v644
  %v646 = vpop.f32.mrf.mxu0
  %647 = vmatprep.mubr.bf16.mxu0 %v241
  %648 = vmatmul.mubr.bf16.gmra.mxu0 %v240
  %v649 = vpop.f32.mrf.mxu0
  %v650 = vadd.f32 %v553, %v649
  %v651 = vpop.f32.mrf.mxu0
  %v652 = vpop.f32.mrf.mxu0
  %v653 = vadd.f32 %v556, %v652
  %v654 = vpop.f32.mrf.mxu0
  %655 = vmatprep.mubr.bf16.mxu0 %v245
  %656 = vmatmul.mubr.bf16.gmra.mxu0 %v244
  %v657 = vpop.f32.mrf.mxu0
  %v658 = vadd.f32 %v561, %v657
  %v659 = vpop.f32.mrf.mxu0
  %v660 = vpop.f32.mrf.mxu0
  %v661 = vadd.f32 %v564, %v660
  %v662 = vpop.f32.mrf.mxu0
  %663 = vdwg.mxu0
  %v664 = vmax.f32 %v602, 0.0
  %v665 = vmax.f32 %v605, 0.0
  %v666 = vmax.f32 %v610, 0.0
  %v667 = vmax.f32 %v613, 0.0
  %v668 = vmax.f32 %v618, 0.0
  %v669 = vmax.f32 %v621, 0.0
  %v670 = vmax.f32 %v626, 0.0
  %v671 = vmax.f32 %v629, 0.0
  %v672 = vmax.f32 %v634, 0.0
  %v673 = vmax.f32 %v637, 0.0
  %v674 = vmax.f32 %v642, 0.0
  %v675 = vmax.f32 %v645, 0.0
  %v676 = vmax.f32 %v650, 0.0
  %v677 = vmax.f32 %v653, 0.0
  %v678 = vmax.f32 %v658, 0.0
  %v679 = vmax.f32 %v661, 0.0
  %vm680 = vcmask 130048
  %681 = vst.msk [vmem:[%s3] sm:$0xff] %vm680, %v664
  %682 = vst.msk [vmem:[%s3 + $0x8] sm:$0xff] %vm680, %v665
  %683 = vst.msk [vmem:[%s3 + $0x10] sm:$0xff] %vm680, %v666
  %684 = vst.msk [vmem:[%s3 + $0x18] sm:$0xff] %vm680, %v667
  %685 = vst.msk [vmem:[%s3 + $0x20] sm:$0xff] %vm680, %v668
  %686 = vst.msk [vmem:[%s3 + $0x28] sm:$0xff] %vm680, %v669
  %687 = vst.msk [vmem:[%s3 + $0x30] sm:$0xff] %vm680, %v670
  %688 = vst.msk [vmem:[%s3 + $0x38] sm:$0xff] %vm680, %v671
  %689 = vst.msk [vmem:[%s3 + $0x40] sm:$0xff] %vm680, %v672
  %690 = vst.msk [vmem:[%s3 + $0x48] sm:$0xff] %vm680, %v673
  %691 = vst.msk [vmem:[%s3 + $0x50] sm:$0xff] %vm680, %v674
  %692 = vst.msk [vmem:[%s3 + $0x58] sm:$0xff] %vm680, %v675
  %693 = vst.msk [vmem:[%s3 + $0x60] sm:$0xff] %vm680, %v676
  %694 = vst.msk [vmem:[%s3 + $0x68] sm:$0xff] %vm680, %v677
  %695 = vst.msk [vmem:[%s3 + $0x70] sm:$0xff] %vm680, %v678
  %696 = vst.msk [vmem:[%s3 + $0x78] sm:$0xff] %vm680, %v679
  // Predicated region
  $region14: #{conv_mae_forward.6} parent=0 // pred_check
    _
  $region15: #{conv_mae_forward.6} parent=0 // pred_check_branch
    %698 = sbr.rel (0) target = $region17
  $region16: #{conv_mae_forward.6} parent=0 // pred_region
    _
  $region17: #{conv_mae_forward.6} parent=0 // pred_fallthru
    _
  // Predicated region
  $region18: #{conv_mae_forward.6} parent=0 // pred_check
    _
  $region19: #{conv_mae_forward.6} parent=0 // pred_check_branch
    %700 = sbr.rel (0) target = $region21
  $region20: #{conv_mae_forward.6} parent=0 // pred_region
    _
  $region21: #{conv_mae_forward.6} parent=0 // pred_fallthru
    _

// kernel: conv_mae_forward.7
$region0: #{conv_mae_forward.7}
  #allocation0 [shape = 'u32[]', space=smem, size = 0x4, offset = 0x4, fixed_abs, tag = 'smem constant byte address 0x4 - core index']
  #allocation1 [shape = 'u32[144,128]{1,0:T(1,128)}', space=vmem, size = 0x12000, scoped, tag = 'internal scratch']
  #allocation2 [shape = 'f32[1,1]{1,0:T(1,128)S(1)}', space=vmem, size = 0x200, scoped, tag = 'scoped memory for conv_mae_forward.7']
  %s0 = inlined_call_operand.vmem [shape: bf16[512,256], index: 0, kind: input, shape index: {}]
  %s1 = inlined_call_operand.vmem [shape: bf16[256,1], index: 1, kind: input, shape index: {}]
  %s2 = inlined_call_operand.<no memory space> [shape: f32[1,1], index: 2, kind: input, shape index: {}]
  %s3 = inlined_call_operand.vmem [shape: f32[512,1], index: 3, kind: output, shape index: {}]
  %s4 = sld [smem:[#allocation0]]
  $region45: #{conv_mae_forward.7} parent=0
    _
  %s6 = ssub.s32 1, %s4
  %s7 = scalar_select 0, %s6, %s4
  %v8 = vstv %s2
  %9 = vst [vmem:[#allocation2] sm:$0x1] %v8
  loop: start=0, step=1, limit=4
  $region2: #{conv_mae_forward.7} parent=0 // loop_pre_header
    _
  $region3: #{conv_mae_forward.7} parent=0 // loop_header
    %s11 = sphi 0, %s15
    %p12 = scmp.ge.s32.totalorder %s11, 4
    %s21 = sphi 0, %s23
    %s24 = sphi 0, %s21
    %s25 = sphi 0, %s24
    %s41 = sphi 0, %s25
    %s45 = sphi 0, %s45
    %s47 = sphi 0, %s45
    %s48 = sphi 0, %s47
    %s62 = sphi 0, %s48
    %s66 = sphi 0, %s66
    %s68 = sphi 0, %s66
    %s69 = sphi 0, %s68
    %s83 = sphi 0, %s69
    %s89 = sphi 0, %s91
    %s92 = sphi 0, %s89
    %s93 = sphi 0, %s92
    %s109 = sphi 0, %s93
  $region4: #{conv_mae_forward.7} parent=0 // loop_header_branch
    %14 = sbr.rel (%p12) target = $region8
  $region5: #{conv_mae_forward.7} parent=0 // loop_body
    %s16 = ssub.s32 %s11, 1
    %s17 = ssub.s32 %s11, 2
    %s18 = sadd.s32 %s11, 1
    %s19 = ssub.s32 %s11, %s18
    %p20 = scmp.eq.s32.totalorder %s19, 0
    %s22 = sadd.s32 %s21, 1
    %s23 = scalar_select %p20, %s21, %s22
    %p26 = pneg %p20
    %p27 = scmp.eq.s32.totalorder %s11, 1
    %p28 = por %p26, %p27
    %p29 = scmp.ne.s32.totalorder %s21, %s24
    %p30 = scmp.eq.s32.totalorder %s11, 0
    %p31 = por %p29, %p30
    %p32 = scmp.ne.s32.totalorder %s21, %s24
    %p33 = scmp.eq.s32.totalorder %s16, 1
    %p34 = por %p32, %p33
    %p35 = scmp.ne.s32.totalorder %s24, %s25
    %p36 = scmp.eq.s32.totalorder %s16, 0
    %p37 = por %p35, %p36
    %p38 = scmp.ne.s32.totalorder %s24, %s25
    %p39 = scmp.eq.s32.totalorder %s17, 1
    %p40 = por %p38, %p39
    %p42 = scmp.ne.s32.totalorder %s25, %s41
    %p43 = scmp.eq.s32.totalorder %s17, 0
    %p44 = por %p42, %p43
    %s46 = sadd.s32 %s45, 1
    %p49 = scmp.eq.s32.totalorder %s11, 1
    %p50 = scmp.ne.s32.totalorder %s45, %s47
    %p51 = scmp.eq.s32.totalorder %s11, 0
    %p52 = por %p50, %p51
    %p53 = scmp.ne.s32.totalorder %s45, %s47
    %p54 = scmp.eq.s32.totalorder %s16, 1
    %p55 = por %p53, %p54
    %p56 = scmp.ne.s32.totalorder %s47, %s48
    %p57 = scmp.eq.s32.totalorder %s16, 0
    %p58 = por %p56, %p57
    %p59 = scmp.ne.s32.totalorder %s47, %s48
    %p60 = scmp.eq.s32.totalorder %s17, 1
    %p61 = por %p59, %p60
    %p63 = scmp.ne.s32.totalorder %s48, %s62
    %p64 = scmp.eq.s32.totalorder %s17, 0
    %p65 = por %p63, %p64
    %s67 = sadd.s32 %s66, 1
    %p70 = scmp.eq.s32.totalorder %s11, 1
    %p71 = scmp.ne.s32.totalorder %s66, %s68
    %p72 = scmp.eq.s32.totalorder %s11, 0
    %p73 = por %p71, %p72
    %p74 = scmp.ne.s32.totalorder %s66, %s68
    %p75 = scmp.eq.s32.totalorder %s16, 1
    %p76 = por %p74, %p75
    %p77 = scmp.ne.s32.totalorder %s68, %s69
    %p78 = scmp.eq.s32.totalorder %s16, 0
    %p79 = por %p77, %p78
    %p80 = scmp.ne.s32.totalorder %s68, %s69
    %p81 = scmp.eq.s32.totalorder %s17, 1
    %p82 = por %p80, %p81
    %p84 = scmp.ne.s32.totalorder %s69, %s83
    %p85 = scmp.eq.s32.totalorder %s17, 0
    %p86 = por %p84, %p85
    %s87 = ssub.s32 %s11, %s18
    %p88 = scmp.eq.s32.totalorder %s87, 0
    %s90 = sadd.s32 %s89, 1
    %s91 = scalar_select %p88, %s89, %s90
    %p94 = pneg %p88
    %p95 = scmp.eq.s32.totalorder %s11, 1
    %p96 = por %p94, %p95
    %p97 = scmp.ne.s32.totalorder %s89, %s92
    %p98 = scmp.eq.s32.totalorder %s11, 0
    %p99 = por %p97, %p98
    %p100 = scmp.ne.s32.totalorder %s89, %s92
    %p101 = scmp.eq.s32.totalorder %s16, 1
    %p102 = por %p100, %p101
    %p103 = scmp.ne.s32.totalorder %s92, %s93
    %p104 = scmp.eq.s32.totalorder %s16, 0
    %p105 = por %p103, %p104
    %p106 = scmp.ne.s32.totalorder %s92, %s93
    %p107 = scmp.eq.s32.totalorder %s17, 1
    %p108 = por %p106, %p107
    %p110 = scmp.ne.s32.totalorder %s93, %s109
    %p111 = scmp.eq.s32.totalorder %s17, 0
    %p112 = por %p110, %p111
    %p113 = scmp.le.s32.totalorder 1, %s11
    %p114 = scmp.lt.s32.totalorder %s11, 3
    %p115 = pnand %p113, %p114
    %p116 = pneg %p115
    // Predicated region
    $region9: #{conv_mae_forward.7} parent=5 // pred_check
      _
    $region10: #{conv_mae_forward.7} parent=5 // pred_check_branch
      %118 = sbr.rel (%p115) target = $region12
    $region11: #{conv_mae_forward.7} parent=5 // pred_region
      %s119 = ssub.s32 %s11, 1
      // Predicated region
      $region13: #{conv_mae_forward.7} parent=11 // pred_check
        %p120 = pneg %p58
      $region14: #{conv_mae_forward.7} parent=11 // pred_check_branch
        %122 = sbr.rel (%p120) target = $region16
      $region15: #{conv_mae_forward.7} parent=11 // pred_region
        _
      $region16: #{conv_mae_forward.7} parent=11 // pred_fallthru
        _
      // Predicated region
      $region17: #{conv_mae_forward.7} parent=11 // pred_check
        %p123 = pneg %p79
      $region18: #{conv_mae_forward.7} parent=11 // pred_check_branch
        %125 = sbr.rel (%p123) target = $region20
      $region19: #{conv_mae_forward.7} parent=11 // pred_region
        _
      $region20: #{conv_mae_forward.7} parent=11 // pred_fallthru
        _
    $region12: #{conv_mae_forward.7} parent=5 // pred_fallthru
      _
    %p126 = scmp.lt.s32.totalorder %s11, 2
    // Predicated region
    $region21: #{conv_mae_forward.7} parent=5 // pred_check
      %p127 = pneg %p126
    $region22: #{conv_mae_forward.7} parent=5 // pred_check_branch
      %129 = sbr.rel (%p127) target = $region24
    $region23: #{conv_mae_forward.7} parent=5 // pred_region
      // Predicated region
      $region25: #{conv_mae_forward.7} parent=23 // pred_check
        %p130 = pneg %p31
      $region26: #{conv_mae_forward.7} parent=23 // pred_check_branch
        %132 = sbr.rel (%p130) target = $region28
      $region27: #{conv_mae_forward.7} parent=23 // pred_region
        %s133 = smul.u32 32, %s11
        %p134 = scmp.lt.s32.totalorder %s133, 63
        %s135 = scalar_select %p134, %s133, 63
        %s136 = smul.addr %s135, 2
        %s137 = smul.addr %s136, 4
        %s138 = scalar_lea.vmem %s0, %s137
        %s139 = smul.u32 32, %s11
      $region28: #{conv_mae_forward.7} parent=23 // pred_fallthru
        _
    $region24: #{conv_mae_forward.7} parent=5 // pred_fallthru
      _
    %p140 = scmp.le.s32.totalorder 1, %s11
    %p141 = scmp.lt.s32.totalorder %s11, 3
    %p142 = pnand %p140, %p141
    %p143 = pneg %p142
    // Predicated region
    $region29: #{conv_mae_forward.7} parent=5 // pred_check
      _
    $region30: #{conv_mae_forward.7} parent=5 // pred_check_branch
      %145 = sbr.rel (%p142) target = $region32
    $region31: #{conv_mae_forward.7} parent=5 // pred_region
      %s146 = ssub.s32 %s11, 1
      %s147 = smul.u32 32, %s16
      %p148 = scmp.lt.s32.totalorder %s147, 63
      %s149 = scalar_select %p148, %s147, 63
      %s150 = smul.addr %s149, 2
      %s151 = smul.addr %s150, 4
      %s152 = scalar_lea.vmem %s0, %s151
      %p153 = pneg %p37
      %p154 = pneg %p34
      %p155 = pneg %p58
      %p156 = pneg %p55
      %p157 = pneg %p79
      %p158 = pneg %p76
      %p159 = pneg %p105
      %p160 = pneg %p102
      %s161 = smul.u32 32, %s16
      %p162 = scmp.lt.s32.totalorder %s161, 63
      %s163 = scalar_select %p162, %s161, 63
      %s164 = smul.addr %s163, 8
      %s165 = scalar_lea.vmem %s3, %s164
      %s166 = smul.u32 32, %s16
      %p167 = scmp.lt.s32.totalorder %s166, 63
      %s168 = scalar_select %p167, %s166, 63
      %s169 = smul.addr %s168, 2
      %s170 = smul.addr %s169, 4
      %s171 = scalar_lea.vmem %s0, %s170
      %s172 = smul.u32 32, %s16
      %s173 = smul.u32 32, %s16
      %p174 = scmp.lt.s32.totalorder %s173, 63
      %s175 = scalar_select %p174, %s173, 63
      %s176 = smul.addr %s175, 8
      %s177 = scalar_lea.vmem %s3, %s176
      %s178 = smul.u32 32, %s16
      %v180 = vld [vmem:[%s171] sm:$0xff]
      %v181 = vld [vmem:[%s171 + $0x8] sm:$0xff]
      %v182 = vld [vmem:[%s171 + $0x10] sm:$0xff]
      %v183 = vld [vmem:[%s171 + $0x18] sm:$0xff]
      %v184 = vld [vmem:[%s171 + $0x20] sm:$0xff]
      %v185 = vld [vmem:[%s171 + $0x28] sm:$0xff]
      %v186 = vld [vmem:[%s171 + $0x30] sm:$0xff]
      %v187 = vld [vmem:[%s171 + $0x38] sm:$0xff]
      %v188 = vld [vmem:[%s171 + $0x40] sm:$0xff]
      %v189 = vld [vmem:[%s171 + $0x48] sm:$0xff]
      %v190 = vld [vmem:[%s171 + $0x50] sm:$0xff]
      %v191 = vld [vmem:[%s171 + $0x58] sm:$0xff]
      %v192 = vld [vmem:[%s171 + $0x60] sm:$0xff]
      %v193 = vld [vmem:[%s171 + $0x68] sm:$0xff]
      %v194 = vld [vmem:[%s171 + $0x70] sm:$0xff]
      %v195 = vld [vmem:[%s171 + $0x78] sm:$0xff]
      %v196 = vld [vmem:[%s171 + $0x80] sm:$0xff]
      %v197 = vld [vmem:[%s171 + $0x88] sm:$0xff]
      %v198 = vld [vmem:[%s171 + $0x90] sm:$0xff]
      %v199 = vld [vmem:[%s171 + $0x98] sm:$0xff]
      %v200 = vld [vmem:[%s171 + $0xa0] sm:$0xff]
      %v201 = vld [vmem:[%s171 + $0xa8] sm:$0xff]
      %v202 = vld [vmem:[%s171 + $0xb0] sm:$0xff]
      %v203 = vld [vmem:[%s171 + $0xb8] sm:$0xff]
      %v204 = vld [vmem:[%s171 + $0xc0] sm:$0xff]
      %v205 = vld [vmem:[%s171 + $0xc8] sm:$0xff]
      %v206 = vld [vmem:[%s171 + $0xd0] sm:$0xff]
      %v207 = vld [vmem:[%s171 + $0xd8] sm:$0xff]
      %v208 = vld [vmem:[%s171 + $0xe0] sm:$0xff]
      %v209 = vld [vmem:[%s171 + $0xe8] sm:$0xff]
      %v210 = vld [vmem:[%s171 + $0xf0] sm:$0xff]
      %v211 = vld [vmem:[%s171 + $0xf8] sm:$0xff]
      %v212 = vld [vmem:[%s1] sm:$0xf]
      %v213 = vld [vmem:[%s1 + $0x4] sm:$0xf]
      %v214 = vld [vmem:[%s1 + $0x8] sm:$0xf]
      %v215 = vld [vmem:[%s1 + $0xc] sm:$0xf]
      %v216 = vld [vmem:[%s1 + $0x10] sm:$0xf]
      %v217 = vld [vmem:[%s1 + $0x14] sm:$0xf]
      %v218 = vld [vmem:[%s1 + $0x18] sm:$0xf]
      %v219 = vld [vmem:[%s1 + $0x1c] sm:$0xf]
      %v220 = vld [vmem:[%s1 + $0x20] sm:$0xf]
      %v221 = vld [vmem:[%s1 + $0x24] sm:$0xf]
      %v222 = vld [vmem:[%s1 + $0x28] sm:$0xf]
      %v223 = vld [vmem:[%s1 + $0x2c] sm:$0xf]
      %v224 = vld [vmem:[%s1 + $0x30] sm:$0xf]
      %v225 = vld [vmem:[%s1 + $0x34] sm:$0xf]
      %v226 = vld [vmem:[%s1 + $0x38] sm:$0xf]
      %v227 = vld [vmem:[%s1 + $0x3c] sm:$0xf]
      %v228 = vld [vmem:[%s1 + $0x40] sm:$0xf]
      %v229 = vld [vmem:[%s1 + $0x44] sm:$0xf]
      %v230 = vld [vmem:[%s1 + $0x48] sm:$0xf]
      %v231 = vld [vmem:[%s1 + $0x4c] sm:$0xf]
      %v232 = vld [vmem:[%s1 + $0x50] sm:$0xf]
      %v233 = vld [vmem:[%s1 + $0x54] sm:$0xf]
      %v234 = vld [vmem:[%s1 + $0x58] sm:$0xf]
      %v235 = vld [vmem:[%s1 + $0x5c] sm:$0xf]
      %v236 = vld [vmem:[%s1 + $0x60] sm:$0xf]
      %v237 = vld [vmem:[%s1 + $0x64] sm:$0xf]
      %v238 = vld [vmem:[%s1 + $0x68] sm:$0xf]
      %v239 = vld [vmem:[%s1 + $0x6c] sm:$0xf]
      %v240 = vld [vmem:[%s1 + $0x70] sm:$0xf]
      %v241 = vld [vmem:[%s1 + $0x74] sm:$0xf]
      %v242 = vld [vmem:[%s1 + $0x78] sm:$0xf]
      %v243 = vld [vmem:[%s1 + $0x7c] sm:$0xf]
      %v244 = vld [vmem:[#allocation2] sm:$0x1]
      %v246 = vlaneseq
      %v247 = vshrl.u32 %v246, 7
      %v248 = vsub.s32 0, %v247
      %v249 = vrot.slane %v244, %v248
      %v283 = vunpack.c.l.b16 %v180
      %v284 = vunpack.c.h.b16 %v180
      %v285 = vunpack.c.l.b16 %v181
      %v286 = vunpack.c.h.b16 %v181
      %v287 = vunpack.c.l.b16 %v182
      %v288 = vunpack.c.h.b16 %v182
      %v289 = vunpack.c.l.b16 %v183
      %v290 = vunpack.c.h.b16 %v183
      %v291 = vunpack.c.l.b16 %v184
      %v292 = vunpack.c.h.b16 %v184
      %v293 = vunpack.c.l.b16 %v185
      %v294 = vunpack.c.h.b16 %v185
      %v295 = vunpack.c.l.b16 %v186
      %v296 = vunpack.c.h.b16 %v186
      %v297 = vunpack.c.l.b16 %v187
      %v298 = vunpack.c.h.b16 %v187
      %v299 = vunpack.c.l.b16 %v188
      %v300 = vunpack.c.h.b16 %v188
      %v301 = vunpack.c.l.b16 %v189
      %v302 = vunpack.c.h.b16 %v189
      %v303 = vunpack.c.l.b16 %v190
      %v304 = vunpack.c.h.b16 %v190
      %v305 = vunpack.c.l.b16 %v191
      %v306 = vunpack.c.h.b16 %v191
      %v307 = vunpack.c.l.b16 %v192
      %v308 = vunpack.c.h.b16 %v192
      %v309 = vunpack.c.l.b16 %v193
      %v310 = vunpack.c.h.b16 %v193
      %v311 = vunpack.c.l.b16 %v194
      %v312 = vunpack.c.h.b16 %v194
      %v313 = vunpack.c.l.b16 %v195
      %v314 = vunpack.c.h.b16 %v195
      %v315 = vunpack.c.l.b16 %v196
      %v316 = vunpack.c.h.b16 %v196
      %v317 = vunpack.c.l.b16 %v197
      %v318 = vunpack.c.h.b16 %v197
      %v319 = vunpack.c.l.b16 %v198
      %v320 = vunpack.c.h.b16 %v198
      %v321 = vunpack.c.l.b16 %v199
      %v322 = vunpack.c.h.b16 %v199
      %v323 = vunpack.c.l.b16 %v200
      %v324 = vunpack.c.h.b16 %v200
      %v325 = vunpack.c.l.b16 %v201
      %v326 = vunpack.c.h.b16 %v201
      %v327 = vunpack.c.l.b16 %v202
      %v328 = vunpack.c.h.b16 %v202
      %v329 = vunpack.c.l.b16 %v203
      %v330 = vunpack.c.h.b16 %v203
      %v331 = vunpack.c.l.b16 %v204
      %v332 = vunpack.c.h.b16 %v204
      %v333 = vunpack.c.l.b16 %v205
      %v334 = vunpack.c.h.b16 %v205
      %v335 = vunpack.c.l.b16 %v206
      %v336 = vunpack.c.h.b16 %v206
      %v337 = vunpack.c.l.b16 %v207
      %v338 = vunpack.c.h.b16 %v207
      %v339 = vunpack.c.l.b16 %v208
      %v340 = vunpack.c.h.b16 %v208
      %v341 = vunpack.c.l.b16 %v209
      %v342 = vunpack.c.h.b16 %v209
      %v343 = vunpack.c.l.b16 %v210
      %v344 = vunpack.c.h.b16 %v210
      %v345 = vunpack.c.l.b16 %v211
      %v346 = vunpack.c.h.b16 %v211
      %v347 = vpack.c.b16 %v285, %v283
      %v348 = vpack.c.b16 %v286, %v284
      %v349 = vpack.c.b16 %v289, %v287
      %v350 = vpack.c.b16 %v290, %v288
      %v351 = vpack.c.b16 %v293, %v291
      %v352 = vpack.c.b16 %v294, %v292
      %v353 = vpack.c.b16 %v297, %v295
      %v354 = vpack.c.b16 %v298, %v296
      %v355 = vpack.c.b16 %v301, %v299
      %v356 = vpack.c.b16 %v302, %v300
      %v357 = vpack.c.b16 %v305, %v303
      %v358 = vpack.c.b16 %v306, %v304
      %v359 = vpack.c.b16 %v309, %v307
      %v360 = vpack.c.b16 %v310, %v308
      %v361 = vpack.c.b16 %v313, %v311
      %v362 = vpack.c.b16 %v314, %v312
      %v363 = vpack.c.b16 %v317, %v315
      %v364 = vpack.c.b16 %v318, %v316
      %v365 = vpack.c.b16 %v321, %v319
      %v366 = vpack.c.b16 %v322, %v320
      %v367 = vpack.c.b16 %v325, %v323
      %v368 = vpack.c.b16 %v326, %v324
      %v369 = vpack.c.b16 %v329, %v327
      %v370 = vpack.c.b16 %v330, %v328
      %v371 = vpack.c.b16 %v333, %v331
      %v372 = vpack.c.b16 %v334, %v332
      %v373 = vpack.c.b16 %v337, %v335
      %v374 = vpack.c.b16 %v338, %v336
      %v375 = vpack.c.b16 %v341, %v339
      %v376 = vpack.c.b16 %v342, %v340
      %v377 = vpack.c.b16 %v345, %v343
      %v378 = vpack.c.b16 %v346, %v344
      %v443 = vunpack.c.l.b16 %v212
      %v444 = vunpack.c.l.b16 %v213
      %v445 = vunpack.c.l.b16 %v214
      %v446 = vunpack.c.l.b16 %v215
      %v447 = vunpack.c.l.b16 %v216
      %v448 = vunpack.c.l.b16 %v217
      %v449 = vunpack.c.l.b16 %v218
      %v450 = vunpack.c.l.b16 %v219
      %v451 = vunpack.c.l.b16 %v220
      %v452 = vunpack.c.l.b16 %v221
      %v453 = vunpack.c.l.b16 %v222
      %v454 = vunpack.c.l.b16 %v223
      %v455 = vunpack.c.l.b16 %v224
      %v456 = vunpack.c.l.b16 %v225
      %v457 = vunpack.c.l.b16 %v226
      %v458 = vunpack.c.l.b16 %v227
      %v459 = vunpack.c.l.b16 %v228
      %v460 = vunpack.c.l.b16 %v229
      %v461 = vunpack.c.l.b16 %v230
      %v462 = vunpack.c.l.b16 %v231
      %v463 = vunpack.c.l.b16 %v232
      %v464 = vunpack.c.l.b16 %v233
      %v465 = vunpack.c.l.b16 %v234
      %v466 = vunpack.c.l.b16 %v235
      %v467 = vunpack.c.l.b16 %v236
      %v468 = vunpack.c.l.b16 %v237
      %v469 = vunpack.c.l.b16 %v238
      %v470 = vunpack.c.l.b16 %v239
      %v471 = vunpack.c.l.b16 %v240
      %v472 = vunpack.c.l.b16 %v241
      %v473 = vunpack.c.l.b16 %v242
      %v474 = vunpack.c.l.b16 %v243
      %v475 = vpack.c.b16 %v444, %v443
      %v476 = vpack.c.b16 %v446, %v445
      %v477 = vpack.c.b16 %v448, %v447
      %v478 = vpack.c.b16 %v450, %v449
      %v479 = vpack.c.b16 %v452, %v451
      %v480 = vpack.c.b16 %v454, %v453
      %v481 = vpack.c.b16 %v456, %v455
      %v482 = vpack.c.b16 %v458, %v457
      %v483 = vpack.c.b16 %v460, %v459
      %v484 = vpack.c.b16 %v462, %v461
      %v485 = vpack.c.b16 %v464, %v463
      %v486 = vpack.c.b16 %v466, %v465
      %v487 = vpack.c.b16 %v468, %v467
      %v488 = vpack.c.b16 %v470, %v469
      %v489 = vpack.c.b16 %v472, %v471
      %v490 = vpack.c.b16 %v474, %v473
      %507 = vmatprep.subr.bf16.mxu0 0
      %508 = vmatpush1.bf16.msra.mxu0 %v482
      %509 = vmatprep.subr.bf16.mxu0 0
      %510 = vmatpush1.bf16.msra.mxu0 %v481
      %511 = vmatprep.subr.bf16.mxu0 0
      %512 = vmatpush1.bf16.msra.mxu0 %v480
      %513 = vmatprep.subr.bf16.mxu0 0
      %514 = vmatpush1.bf16.msra.mxu0 %v479
      %515 = vmatprep.subr.bf16.mxu0 0
      %516 = vmatpush1.bf16.msra.mxu0 %v478
      %517 = vmatprep.subr.bf16.mxu0 0
      %518 = vmatpush1.bf16.msra.mxu0 %v477
      %519 = vmatprep.subr.bf16.mxu0 0
      %520 = vmatpush1.bf16.msra.mxu0 %v476
      %521 = vmatprep.subr.bf16.mxu0 0
      %522 = vmatpush1.bf16.msra.mxu0 %v475
      %523 = vmatprep.subr.bf16.mxu0 0
      %524 = vmatpush2.bf16.msra.mxu0 %v490
      %525 = vmatprep.subr.bf16.mxu0 0
      %526 = vmatpush2.bf16.msra.mxu0 %v489
      %527 = vmatprep.subr.bf16.mxu0 0
      %528 = vmatpush2.bf16.msra.mxu0 %v488
      %529 = vmatprep.subr.bf16.mxu0 0
      %530 = vmatpush2.bf16.msra.mxu0 %v487
      %531 = vmatprep.subr.bf16.mxu0 0
      %532 = vmatpush2.bf16.msra.mxu0 %v486
      %533 = vmatprep.subr.bf16.mxu0 0
      %534 = vmatpush2.bf16.msra.mxu0 %v485
      %535 = vmatprep.subr.bf16.mxu0 0
      %536 = vmatpush2.bf16.msra.mxu0 %v484
      %537 = vmatprep.subr.bf16.mxu0 0
      %538 = vmatpush2.bf16.msra.mxu0 %v483
      %539 = vmatprep.mubr.bf16.mxu0 %v348
      %540 = vmatmul.mubr.bf16.gmra.mxu0 %v347
      %v541 = vpop.f32.mrf.mxu0
      %v542 = vadd.f32 %v249, %v541
      %v543 = vpop.f32.mrf.mxu0
      %v544 = vpop.f32.mrf.mxu0
      %v545 = vadd.f32 %v249, %v544
      %v546 = vpop.f32.mrf.mxu0
      %547 = vmatprep.mubr.bf16.mxu0 %v350
      %548 = vmatmul.mubr.bf16.gmra.mxu0 %v349
      %v549 = vpop.f32.mrf.mxu0
      %v550 = vadd.f32 %v249, %v549
      %v551 = vpop.f32.mrf.mxu0
      %v552 = vpop.f32.mrf.mxu0
      %v553 = vadd.f32 %v249, %v552
      %v554 = vpop.f32.mrf.mxu0
      %555 = vmatprep.mubr.bf16.mxu0 %v352
      %556 = vmatmul.mubr.bf16.gmra.mxu0 %v351
      %v557 = vpop.f32.mrf.mxu0
      %v558 = vadd.f32 %v249, %v557
      %v559 = vpop.f32.mrf.mxu0
      %v560 = vpop.f32.mrf.mxu0
      %v561 = vadd.f32 %v249, %v560
      %v562 = vpop.f32.mrf.mxu0
      %563 = vmatprep.mubr.bf16.mxu0 %v354
      %564 = vmatmul.mubr.bf16.gmra.mxu0 %v353
      %v565 = vpop.f32.mrf.mxu0
      %v566 = vadd.f32 %v249, %v565
      %v567 = vpop.f32.mrf.mxu0
      %v568 = vpop.f32.mrf.mxu0
      %v569 = vadd.f32 %v249, %v568
      %v570 = vpop.f32.mrf.mxu0
      %571 = vmatprep.mubr.bf16.mxu0 %v356
      %572 = vmatmul.mubr.bf16.gmra.mxu0 %v355
      %v573 = vpop.f32.mrf.mxu0
      %v574 = vadd.f32 %v249, %v573
      %v575 = vpop.f32.mrf.mxu0
      %v576 = vpop.f32.mrf.mxu0
      %v577 = vadd.f32 %v249, %v576
      %v578 = vpop.f32.mrf.mxu0
      %579 = vmatprep.mubr.bf16.mxu0 %v358
      %580 = vmatmul.mubr.bf16.gmra.mxu0 %v357
      %v581 = vpop.f32.mrf.mxu0
      %v582 = vadd.f32 %v249, %v581
      %v583 = vpop.f32.mrf.mxu0
      %v584 = vpop.f32.mrf.mxu0
      %v585 = vadd.f32 %v249, %v584
      %v586 = vpop.f32.mrf.mxu0
      %587 = vmatprep.mubr.bf16.mxu0 %v360
      %588 = vmatmul.mubr.bf16.gmra.mxu0 %v359
      %v589 = vpop.f32.mrf.mxu0
      %v590 = vadd.f32 %v249, %v589
      %v591 = vpop.f32.mrf.mxu0
      %v592 = vpop.f32.mrf.mxu0
      %v593 = vadd.f32 %v249, %v592
      %v594 = vpop.f32.mrf.mxu0
      %595 = vmatprep.mubr.bf16.mxu0 %v362
      %596 = vmatmul.mubr.bf16.gmra.mxu0 %v361
      %v597 = vpop.f32.mrf.mxu0
      %v598 = vadd.f32 %v249, %v597
      %v599 = vpop.f32.mrf.mxu0
      %v600 = vpop.f32.mrf.mxu0
      %v601 = vadd.f32 %v249, %v600
      %v602 = vpop.f32.mrf.mxu0
      %603 = vmatprep.mubr.bf16.mxu0 %v364
      %604 = vmatmul.mubr.bf16.gmra.mxu0 %v363
      %v605 = vpop.f32.mrf.mxu0
      %v606 = vadd.f32 %v249, %v605
      %v607 = vpop.f32.mrf.mxu0
      %v608 = vpop.f32.mrf.mxu0
      %v609 = vadd.f32 %v249, %v608
      %v610 = vpop.f32.mrf.mxu0
      %611 = vmatprep.mubr.bf16.mxu0 %v366
      %612 = vmatmul.mubr.bf16.gmra.mxu0 %v365
      %v613 = vpop.f32.mrf.mxu0
      %v614 = vadd.f32 %v249, %v613
      %v615 = vpop.f32.mrf.mxu0
      %v616 = vpop.f32.mrf.mxu0
      %v617 = vadd.f32 %v249, %v616
      %v618 = vpop.f32.mrf.mxu0
      %619 = vmatprep.mubr.bf16.mxu0 %v368
      %620 = vmatmul.mubr.bf16.gmra.mxu0 %v367
      %v621 = vpop.f32.mrf.mxu0
      %v622 = vadd.f32 %v249, %v621
      %v623 = vpop.f32.mrf.mxu0
      %v624 = vpop.f32.mrf.mxu0
      %v625 = vadd.f32 %v249, %v624
      %v626 = vpop.f32.mrf.mxu0
      %627 = vmatprep.mubr.bf16.mxu0 %v370
      %628 = vmatmul.mubr.bf16.gmra.mxu0 %v369
      %v629 = vpop.f32.mrf.mxu0
      %v630 = vadd.f32 %v249, %v629
      %v631 = vpop.f32.mrf.mxu0
      %v632 = vpop.f32.mrf.mxu0
      %v633 = vadd.f32 %v249, %v632
      %v634 = vpop.f32.mrf.mxu0
      %635 = vmatprep.mubr.bf16.mxu0 %v372
      %636 = vmatmul.mubr.bf16.gmra.mxu0 %v371
      %v637 = vpop.f32.mrf.mxu0
      %v638 = vadd.f32 %v249, %v637
      %v639 = vpop.f32.mrf.mxu0
      %v640 = vpop.f32.mrf.mxu0
      %v641 = vadd.f32 %v249, %v640
      %v642 = vpop.f32.mrf.mxu0
      %643 = vmatprep.mubr.bf16.mxu0 %v374
      %644 = vmatmul.mubr.bf16.gmra.mxu0 %v373
      %v645 = vpop.f32.mrf.mxu0
      %v646 = vadd.f32 %v249, %v645
      %v647 = vpop.f32.mrf.mxu0
      %v648 = vpop.f32.mrf.mxu0
      %v649 = vadd.f32 %v249, %v648
      %v650 = vpop.f32.mrf.mxu0
      %651 = vmatprep.mubr.bf16.mxu0 %v376
      %652 = vmatmul.mubr.bf16.gmra.mxu0 %v375
      %v653 = vpop.f32.mrf.mxu0
      %v654 = vadd.f32 %v249, %v653
      %v655 = vpop.f32.mrf.mxu0
      %v656 = vpop.f32.mrf.mxu0
      %v657 = vadd.f32 %v249, %v656
      %v658 = vpop.f32.mrf.mxu0
      %659 = vmatprep.mubr.bf16.mxu0 %v378
      %660 = vmatmul.mubr.bf16.gmra.mxu0 %v377
      %v661 = vpop.f32.mrf.mxu0
      %v662 = vadd.f32 %v249, %v661
      %v663 = vpop.f32.mrf.mxu0
      %v664 = vpop.f32.mrf.mxu0
      %v665 = vadd.f32 %v249, %v664
      %v666 = vpop.f32.mrf.mxu0
      %667 = vdwg.mxu0
      %v668 = vsub.f32 0.0, %v542
      %v669 = vsub.f32 0.0, %v545
      %v670 = vsub.f32 0.0, %v550
      %v671 = vsub.f32 0.0, %v553
      %v672 = vsub.f32 0.0, %v558
      %v673 = vsub.f32 0.0, %v561
      %v674 = vsub.f32 0.0, %v566
      %v675 = vsub.f32 0.0, %v569
      %v676 = vsub.f32 0.0, %v574
      %v677 = vsub.f32 0.0, %v577
      %v678 = vsub.f32 0.0, %v582
      %v679 = vsub.f32 0.0, %v585
      %v680 = vsub.f32 0.0, %v590
      %v681 = vsub.f32 0.0, %v593
      %v682 = vsub.f32 0.0, %v598
      %v683 = vsub.f32 0.0, %v601
      %v684 = vsub.f32 0.0, %v606
      %v685 = vsub.f32 0.0, %v609
      %v686 = vsub.f32 0.0, %v614
      %v687 = vsub.f32 0.0, %v617
      %v688 = vsub.f32 0.0, %v622
      %v689 = vsub.f32 0.0, %v625
      %v690 = vsub.f32 0.0, %v630
      %v691 = vsub.f32 0.0, %v633
      %v692 = vsub.f32 0.0, %v638
      %v693 = vsub.f32 0.0, %v641
      %v694 = vsub.f32 0.0, %v646
      %v695 = vsub.f32 0.0, %v649
      %v696 = vsub.f32 0.0, %v654
      %v697 = vsub.f32 0.0, %v657
      %v698 = vsub.f32 0.0, %v662
      %v699 = vsub.f32 0.0, %v665
      %v700 = vmul.f32 %v668, 1.442695
      %v701 = vpow.pop %v700
      %v702 = vmul.f32 %v669, 1.442695
      %v703 = vpow.pop %v702
      %v704 = vmul.f32 %v670, 1.442695
      %v705 = vpow.pop %v704
      %v706 = vmul.f32 %v671, 1.442695
      %v707 = vpow.pop %v706
      %v708 = vmul.f32 %v672, 1.442695
      %v709 = vpow.pop %v708
      %v710 = vmul.f32 %v673, 1.442695
      %v711 = vpow.pop %v710
      %v712 = vmul.f32 %v674, 1.442695
      %v713 = vpow.pop %v712
      %v714 = vmul.f32 %v675, 1.442695
      %v715 = vpow.pop %v714
      %v716 = vmul.f32 %v676, 1.442695
      %v717 = vpow.pop %v716
      %v718 = vmul.f32 %v677, 1.442695
      %v719 = vpow.pop %v718
      %v720 = vmul.f32 %v678, 1.442695
      %v721 = vpow.pop %v720
      %v722 = vmul.f32 %v679, 1.442695
      %v723 = vpow.pop %v722
      %v724 = vmul.f32 %v680, 1.442695
      %v725 = vpow.pop %v724
      %v726 = vmul.f32 %v681, 1.442695
      %v727 = vpow.pop %v726
      %v728 = vmul.f32 %v682, 1.442695
      %v729 = vpow.pop %v728
      %v730 = vmul.f32 %v683, 1.442695
      %v731 = vpow.pop %v730
      %v732 = vmul.f32 %v684, 1.442695
      %v733 = vpow.pop %v732
      %v734 = vmul.f32 %v685, 1.442695
      %v735 = vpow.pop %v734
      %v736 = vmul.f32 %v686, 1.442695
      %v737 = vpow.pop %v736
      %v738 = vmul.f32 %v687, 1.442695
      %v739 = vpow.pop %v738
      %v740 = vmul.f32 %v688, 1.442695
      %v741 = vpow.pop %v740
      %v742 = vmul.f32 %v689, 1.442695
      %v743 = vpow.pop %v742
      %v744 = vmul.f32 %v690, 1.442695
      %v745 = vpow.pop %v744
      %v746 = vmul.f32 %v691, 1.442695
      %v747 = vpow.pop %v746
      %v748 = vmul.f32 %v692, 1.442695
      %v749 = vpow.pop %v748
      %v750 = vmul.f32 %v693, 1.442695
      %v751 = vpow.pop %v750
      %v752 = vmul.f32 %v694, 1.442695
      %v753 = vpow.pop %v752
      %v754 = vmul.f32 %v695, 1.442695
      %v755 = vpow.pop %v754
      %v756 = vmul.f32 %v696, 1.442695
      %v757 = vpow.pop %v756
      %v758 = vmul.f32 %v697, 1.442695
      %v759 = vpow.pop %v758
      %v760 = vmul.f32 %v698, 1.442695
      %v761 = vpow.pop %v760
      %v762 = vmul.f32 %v699, 1.442695
      %v763 = vpow.pop %v762
      %v764 = vadd.f32 %v701, 1.0
      %v765 = vadd.f32 %v703, 1.0
      %v766 = vadd.f32 %v705, 1.0
      %v767 = vadd.f32 %v707, 1.0
      %v768 = vadd.f32 %v709, 1.0
      %v769 = vadd.f32 %v711, 1.0
      %v770 = vadd.f32 %v713, 1.0
      %v771 = vadd.f32 %v715, 1.0
      %v772 = vadd.f32 %v717, 1.0
      %v773 = vadd.f32 %v719, 1.0
      %v774 = vadd.f32 %v721, 1.0
      %v775 = vadd.f32 %v723, 1.0
      %v776 = vadd.f32 %v725, 1.0
      %v777 = vadd.f32 %v727, 1.0
      %v778 = vadd.f32 %v729, 1.0
      %v779 = vadd.f32 %v731, 1.0
      %v780 = vadd.f32 %v733, 1.0
      %v781 = vadd.f32 %v735, 1.0
      %v782 = vadd.f32 %v737, 1.0
      %v783 = vadd.f32 %v739, 1.0
      %v784 = vadd.f32 %v741, 1.0
      %v785 = vadd.f32 %v743, 1.0
      %v786 = vadd.f32 %v745, 1.0
      %v787 = vadd.f32 %v747, 1.0
      %v788 = vadd.f32 %v749, 1.0
      %v789 = vadd.f32 %v751, 1.0
      %v790 = vadd.f32 %v753, 1.0
      %v791 = vadd.f32 %v755, 1.0
      %v792 = vadd.f32 %v757, 1.0
      %v793 = vadd.f32 %v759, 1.0
      %v794 = vadd.f32 %v761, 1.0
      %v795 = vadd.f32 %v763, 1.0
      %v796 = vrcp.pop %v764
      %v797 = vrcp.pop %v765
      %v798 = vrcp.pop %v766
      %v799 = vrcp.pop %v767
      %v800 = vrcp.pop %v768
      %v801 = vrcp.pop %v769
      %v802 = vrcp.pop %v770
      %v803 = vrcp.pop %v771
      %v804 = vrcp.pop %v772
      %v805 = vrcp.pop %v773
      %v806 = vrcp.pop %v774
      %v807 = vrcp.pop %v775
      %v808 = vrcp.pop %v776
      %v809 = vrcp.pop %v777
      %v810 = vrcp.pop %v778
      %v811 = vrcp.pop %v779
      %v812 = vrcp.pop %v780
      %v813 = vrcp.pop %v781
      %v814 = vrcp.pop %v782
      %v815 = vrcp.pop %v783
      %v816 = vrcp.pop %v784
      %v817 = vrcp.pop %v785
      %v818 = vrcp.pop %v786
      %v819 = vrcp.pop %v787
      %v820 = vrcp.pop %v788
      %v821 = vrcp.pop %v789
      %v822 = vrcp.pop %v790
      %v823 = vrcp.pop %v791
      %v824 = vrcp.pop %v792
      %v825 = vrcp.pop %v793
      %v826 = vrcp.pop %v794
      %v827 = vrcp.pop %v795
      %vm828 = vcmask 7168
      %829 = vst.msk [vmem:[%s177] sm:$0xff] %vm828, %v796
      %830 = vst.msk [vmem:[%s177 + $0x8] sm:$0xff] %vm828, %v797
      %831 = vst.msk [vmem:[%s177 + $0x10] sm:$0xff] %vm828, %v798
      %832 = vst.msk [vmem:[%s177 + $0x18] sm:$0xff] %vm828, %v799
      %833 = vst.msk [vmem:[%s177 + $0x20] sm:$0xff] %vm828, %v800
      %834 = vst.msk [vmem:[%s177 + $0x28] sm:$0xff] %vm828, %v801
      %835 = vst.msk [vmem:[%s177 + $0x30] sm:$0xff] %vm828, %v802
      %836 = vst.msk [vmem:[%s177 + $0x38] sm:$0xff] %vm828, %v803
      %837 = vst.msk [vmem:[%s177 + $0x40] sm:$0xff] %vm828, %v804
      %838 = vst.msk [vmem:[%s177 + $0x48] sm:$0xff] %vm828, %v805
      %839 = vst.msk [vmem:[%s177 + $0x50] sm:$0xff] %vm828, %v806
      %840 = vst.msk [vmem:[%s177 + $0x58] sm:$0xff] %vm828, %v807
      %841 = vst.msk [vmem:[%s177 + $0x60] sm:$0xff] %vm828, %v808
      %842 = vst.msk [vmem:[%s177 + $0x68] sm:$0xff] %vm828, %v809
      %843 = vst.msk [vmem:[%s177 + $0x70] sm:$0xff] %vm828, %v810
      %844 = vst.msk [vmem:[%s177 + $0x78] sm:$0xff] %vm828, %v811
      %845 = vst.msk [vmem:[%s177 + $0x80] sm:$0xff] %vm828, %v812
      %846 = vst.msk [vmem:[%s177 + $0x88] sm:$0xff] %vm828, %v813
      %847 = vst.msk [vmem:[%s177 + $0x90] sm:$0xff] %vm828, %v814
      %848 = vst.msk [vmem:[%s177 + $0x98] sm:$0xff] %vm828, %v815
      %849 = vst.msk [vmem:[%s177 + $0xa0] sm:$0xff] %vm828, %v816
      %850 = vst.msk [vmem:[%s177 + $0xa8] sm:$0xff] %vm828, %v817
      %851 = vst.msk [vmem:[%s177 + $0xb0] sm:$0xff] %vm828, %v818
      %852 = vst.msk [vmem:[%s177 + $0xb8] sm:$0xff] %vm828, %v819
      %853 = vst.msk [vmem:[%s177 + $0xc0] sm:$0xff] %vm828, %v820
      %854 = vst.msk [vmem:[%s177 + $0xc8] sm:$0xff] %vm828, %v821
      %855 = vst.msk [vmem:[%s177 + $0xd0] sm:$0xff] %vm828, %v822
      %856 = vst.msk [vmem:[%s177 + $0xd8] sm:$0xff] %vm828, %v823
      %857 = vst.msk [vmem:[%s177 + $0xe0] sm:$0xff] %vm828, %v824
      %858 = vst.msk [vmem:[%s177 + $0xe8] sm:$0xff] %vm828, %v825
      %859 = vst.msk [vmem:[%s177 + $0xf0] sm:$0xff] %vm828, %v826
      %860 = vst.msk [vmem:[%s177 + $0xf8] sm:$0xff] %vm828, %v827
      %s861 = smul.u32 32, %s16
      %p862 = scmp.lt.s32.totalorder %s861, 63
      %s863 = scalar_select %p862, %s861, 63
      %s864 = smul.addr %s863, 8
      %s865 = scalar_lea.vmem %s3, %s864
      // Predicated region
      $region33: #{conv_mae_forward.7} parent=31 // pred_check
        %p866 = pneg %p102
      $region34: #{conv_mae_forward.7} parent=31 // pred_check_branch
        %868 = sbr.rel (%p866) target = $region36
      $region35: #{conv_mae_forward.7} parent=31 // pred_region
        %s869 = smul.u32 32, %s16
      $region36: #{conv_mae_forward.7} parent=31 // pred_fallthru
        _
    $region32: #{conv_mae_forward.7} parent=5 // pred_fallthru
      _
    %p870 = scmp.le.s32.totalorder 2, %s11
    // Predicated region
    $region37: #{conv_mae_forward.7} parent=5 // pred_check
      %p871 = pneg %p870
    $region38: #{conv_mae_forward.7} parent=5 // pred_check_branch
      %873 = sbr.rel (%p871) target = $region40
    $region39: #{conv_mae_forward.7} parent=5 // pred_region
      %s874 = ssub.s32 %s11, 2
      // Predicated region
      $region41: #{conv_mae_forward.7} parent=39 // pred_check
        %p875 = pneg %p108
      $region42: #{conv_mae_forward.7} parent=39 // pred_check_branch
        %877 = sbr.rel (%p875) target = $region44
      $region43: #{conv_mae_forward.7} parent=39 // pred_region
        %s878 = smul.u32 32, %s17
        %p879 = scmp.lt.s32.totalorder %s878, 63
        %s880 = scalar_select %p879, %s878, 63
        %s881 = smul.addr %s880, 8
        %s882 = scalar_lea.vmem %s3, %s881
      $region44: #{conv_mae_forward.7} parent=39 // pred_fallthru
        _
    $region40: #{conv_mae_forward.7} parent=5 // pred_fallthru
      _
  $region6: #{conv_mae_forward.7} parent=0 // loop_footer
    %s15 = sadd.s32 1, %s11
  $region7: #{conv_mae_forward.7} parent=0 // loop_footer_branch
    %10 = sbr.rel target = $region3
  $region8: #{conv_mae_forward.7} parent=0 // loop_exit
    _

</llo_original>
